<compile_context>
chip_gen: v6e
topology: v6e:2x2x1
jax: 0.10.0
libtpu: 0.0.40
codegen_flags: <defaults>
</compile_context>

<pallas_src>
from functools import partial

import jax
import jax.numpy as jnp
from jax.experimental import pallas as pl
from jax.experimental.pallas import tpu as pltpu


def _round_up(v, m):
    return ((v + m - 1) // m) * m


# ----------------------------------------------------------------------------
# Fused kernel: layer-1 GEMMs -> BatchNorm2d (batch stats) -> SiLU ->
#               layer-2 wide GEMM + block-diagonal reduction + bias
# ----------------------------------------------------------------------------
def _make_kernel(B, HW, C1p, Ep):
    assert HW & (HW - 1) == 0, "HW must be a power of two (it is 16 here)"
    nrows = B * HW
    inv_n = 1.0 / float(nrows)

    def kernel(xm_ref, c_ref, w1x_ref, w1c_ref, b1_ref, g_ref, be_ref,
               w2_ref, b2_ref, o_ref):
        # ---- layer 1: 1x1 conv --------------------------------------------
        # x channels: one M = B*HW GEMM; condition channels: one M = B GEMM,
        # broadcast over the 16 spatial positions of each batch element.
        yx = jnp.dot(xm_ref[...], w1x_ref[...],
                     preferred_element_type=jnp.float32)          # [B*HW, C1p]
        yc = jnp.dot(c_ref[...], w1c_ref[...],
                     preferred_element_type=jnp.float32)          # [B,    C1p]
        y = (yx.reshape(B, HW, C1p) + yc[:, None, :]).reshape(nrows, C1p)
        y = y + b1_ref[...]          # conv bias (cancelled by BN mean, kept for fidelity)

        # ---- BatchNorm2d, training-mode batch stats, single pass -----------
        s1 = jnp.sum(y, axis=0, keepdims=True)
        s2 = jnp.sum(y * y, axis=0, keepdims=True)
        mean = s1 * inv_n
        var = s2 * inv_n - mean * mean                           # biased variance
        scale = jax.lax.rsqrt(var + 1e-5) * g_ref[...]
        shift = be_ref[...] - mean * scale
        y = y * scale + shift

        # ---- SiLU (f32 VPU + EUP sigmoid); single bf16 downcast ------------
        y = y * jax.nn.sigmoid(y)
        yb = y.astype(jnp.bfloat16)                              # [B*HW, C1p]

        # ---- layer 2: Conv2d(C1, E, 4, valid) as ONE wide GEMM -------------
        # w2 is [C1p, HW*Ep] with lane block hw holding pixel hw's filters, so
        # a single lane-dense MXU contraction produces every per-pixel partial.
        p = jnp.dot(yb, w2_ref[...],
                    preferred_element_type=jnp.float32)          # [B*HW, HW*Ep]

        # Select the block diagonal: row (b, hw) keeps only lane block hw.
        row_hw = jnp.bitwise_and(
            jax.lax.broadcasted_iota(jnp.int32, (nrows, 1), 0), HW - 1)
        blocks = [
            jnp.where(row_hw == hw, p[:, hw * Ep:(hw + 1) * Ep], 0.0)
            for hw in range(HW)
        ]
        while len(blocks) > 1:                                   # tree reduction
            blocks = [blocks[i] + blocks[i + 1] if i + 1 < len(blocks)
                      else blocks[i]
                      for i in range(0, len(blocks), 2)]
        t = blocks[0]                                            # [B*HW, Ep]

        # Sum the 16 per-pixel contributions of each batch element + bias.
        out = jnp.sum(t.reshape(B, HW, Ep), axis=1) + b2_ref[...]   # [B, Ep]
        o_ref[...] = out.astype(o_ref.dtype)

    return kernel


# ----------------------------------------------------------------------------
# Parameters: deterministic synthetic init (PyTorch layer shapes) + one-time
# conversion to the TPU-friendly, lane-padded kernel layouts.
# ----------------------------------------------------------------------------
def init_params(key, in_chans, condition_dim, text_embedding_dim):
    C1 = 8 * in_chans
    Cx = C1
    cond = condition_dim
    E = text_embedding_dim
    HW = 16
    C1p = _round_up(C1, 128)
    Ep = _round_up(E, 128)

    ks = jax.random.split(key, 4)

    def nrm(k, shape, scale=0.05):
        return scale * jax.random.normal(k, shape, dtype=jnp.float32)

    # ---- raw PyTorch-layout weights (fresh module) --------------------------
    w1_t = nrm(ks[0], (C1, Cx + cond))          # Conv2d(Cx+cond, C1, 1) weight
    b1_t = nrm(ks[1], (C1,))                    # its bias
    gamma_t = jnp.ones((C1,), jnp.float32)      # BatchNorm2d: fresh -> gamma=1
    beta_t = jnp.zeros((C1,), jnp.float32)      #                      beta=0
    w2_t = nrm(ks[2], (E, C1, 4, 4))            # Conv2d(C1, E, 4) weight
    b2_t = nrm(ks[3], (E,))                     # its bias

    raw = dict(w1=w1_t, b1=b1_t, gamma=gamma_t, beta=beta_t, w2=w2_t, b2=b2_t)

    # ---- kernel layouts, lane-padded to 128 (done once, offline) ------------
    pc1 = C1p - C1
    pe = Ep - E
    w1x = jnp.pad(w1_t[:, :Cx].T, ((0, 0), (0, pc1))).astype(jnp.bfloat16)   # [Cx, C1p]
    w1c = jnp.pad(w1_t[:, Cx:].T, ((0, 0), (0, pc1))).astype(jnp.bfloat16)   # [cond, C1p]
    b1 = jnp.pad(b1_t, (0, pc1)).reshape(1, C1p)
    gamma = jnp.pad(gamma_t, (0, pc1), constant_values=1.0).reshape(1, C1p)
    beta = jnp.pad(beta_t, (0, pc1)).reshape(1, C1p)
    # w2wide[c, hw*Ep + e] = w2_t[e, c, kh, kw] with hw = kh*4 + kw.
    w2 = jnp.transpose(w2_t, (1, 2, 3, 0))                        # [C1, 4, 4, E]
    w2 = jnp.pad(w2, ((0, pc1), (0, 0), (0, 0), (0, pe)))          # [C1p, 4, 4, Ep]
    w2 = w2.reshape(C1p, HW * Ep).astype(jnp.bfloat16)
    b2 = jnp.pad(b2_t, (0, pe)).reshape(1, Ep)

    params = dict(w1x=w1x, w1c=w1c, b1=b1, gamma=gamma, beta=beta, w2=w2, b2=b2)
    return params, raw


# ----------------------------------------------------------------------------
# Forward pass (jitted so the layout glue fuses around the single pallas_call)
# ----------------------------------------------------------------------------
@partial(jax.jit, static_argnames=("e_dim",))
def align_cond_discriminator(params, x, c, e_dim):
    """x: [B, 8*in_chans, 4, 4]   c: [B, condition_dim]   -> [B, e_dim]."""
    B, Cx, H, W = x.shape
    assert (H, W) == (4, 4), "module is hard-wired to a 4x4 map"
    cond = c.shape[-1]
    HW = H * W
    C1p = params["w1x"].shape[1]
    Ep = params["b2"].shape[1]

    # Layout prep only (no FLOPs): batch-major rows (row = b*HW + hw),
    # channels on lanes.  No tile / concat of the condition vector.
    xm = jnp.transpose(x, (0, 2, 3, 1)).reshape(B * HW, Cx).astype(jnp.bfloat16)
    cb = c.astype(jnp.bfloat16)

    out = pl.pallas_call(
        _make_kernel(B, HW, C1p, Ep),
        out_shape=jax.ShapeDtypeStruct((B, Ep), jnp.float32),
        grid=(1,),
        in_specs=[
            pl.BlockSpec((B * HW, Cx), lambda i: (0, 0)),
            pl.BlockSpec((B, cond), lambda i: (0, 0)),
            pl.BlockSpec((Cx, C1p), lambda i: (0, 0)),
            pl.BlockSpec((cond, C1p), lambda i: (0, 0)),
            pl.BlockSpec((1, C1p), lambda i: (0, 0)),
            pl.BlockSpec((1, C1p), lambda i: (0, 0)),
            pl.BlockSpec((1, C1p), lambda i: (0, 0)),
            pl.BlockSpec((C1p, HW * Ep), lambda i: (0, 0)),
            pl.BlockSpec((1, Ep), lambda i: (0, 0)),
        ],
        out_specs=pl.BlockSpec((B, Ep), lambda i: (0, 0)),
        compiler_params=pltpu.CompilerParams(
            dimension_semantics=("arbitrary",),
        ),
    )(xm, cb, params["w1x"], params["w1c"], params["b1"],
      params["gamma"], params["beta"], params["w2"], params["b2"])

    out = out[:, :e_dim]
    # PyTorch returns align_out.squeeze() on [B, E, 1, 1]; drop batch for B == 1.
    return out[0] if B == 1 else out


# ----------------------------------------------------------------------------
# Pure-JAX f32 reference (mirrors the PyTorch module) for validation.
# ----------------------------------------------------------------------------
def reference_forward(raw, x, c):
    B = x.shape[0]
    cmap = jnp.broadcast_to(c[:, :, None, None], (B, c.shape[1], 4, 4))
    xin = jnp.concatenate([x, cmap], axis=1)                      # [B, Cin, 4, 4]
    y = jnp.einsum("oi,bihw->bohw", raw["w1"], xin) \
        + raw["b1"][None, :, None, None]
    mean = jnp.mean(y, axis=(0, 2, 3), keepdims=True)
    var = jnp.mean((y - mean) ** 2, axis=(0, 2, 3), keepdims=True)
    y = (y - mean) * jax.lax.rsqrt(var + 1e-5)
    y = y * raw["gamma"][None, :, None, None] + raw["beta"][None, :, None, None]
    y = y * jax.nn.sigmoid(y)
    out = jnp.einsum("eohw,bohw->be", raw["w2"], y) + raw["b2"][None, :]
    return out


# ----------------------------------------------------------------------------
if __name__ == "__main__":
    in_chans = 8               # Nd -> 8*Nd = 64 channels
    condition_dim = 16
    text_embedding_dim = 64
    batch = 2

    key = jax.random.PRNGKey(0)
    kp, kx, kc = jax.random.split(key, 3)
    params, raw = init_params(kp, in_chans, condition_dim, text_embedding_dim)

    x = jax.random.normal(kx, (batch, 8 * in_chans, 4, 4), dtype=jnp.float32)
    c = jax.random.normal(kc, (batch, condition_dim), dtype=jnp.float32)

    out = align_cond_discriminator(params, x, c, e_dim=text_embedding_dim)
    out = jax.block_until_ready(out)

    assert out.shape == (batch, text_embedding_dim), out.shape
    assert bool(jnp.all(jnp.isfinite(out)))

    # Correctness vs. f32 reference (kernel uses bf16 MXU inputs -> loose tol).
    ref = reference_forward(raw, x, c)
    assert bool(jnp.allclose(out, ref, atol=5e-2, rtol=5e-2)), (
        float(jnp.max(jnp.abs(out - ref))))

    print("KERNEL_OK")
</pallas_src>

<mosaic_0001>
module attributes {stable_mosaic.version = 11 : i64} {
  func.func @kernel(%arg0: i32, %arg1: memref<32x64xbf16, #tpu.memory_space<vmem>>, %arg2: memref<2x16xbf16, #tpu.memory_space<vmem>>, %arg3: memref<64x128xbf16, #tpu.memory_space<vmem>>, %arg4: memref<16x128xbf16, #tpu.memory_space<vmem>>, %arg5: memref<1x128xf32, #tpu.memory_space<vmem>>, %arg6: memref<1x128xf32, #tpu.memory_space<vmem>>, %arg7: memref<1x128xf32, #tpu.memory_space<vmem>>, %arg8: memref<128x2048xbf16, #tpu.memory_space<vmem>>, %arg9: memref<1x128xf32, #tpu.memory_space<vmem>>, %arg10: memref<2x128xf32, #tpu.memory_space<vmem>>) attributes {dimension_semantics = [#tpu.dimension_semantics<arbitrary>], iteration_bounds = array<i64: 1>, scalar_prefetch = 0 : i64, scratch_operands = 0 : i64, tpu.core_type = #tpu.core_type<tc>, window_params = [{pipeline_mode = #tpu.pipeline_mode<synchronous>, transform_indices = @transform_0, window_bounds = array<i64: 32, 64>}, {pipeline_mode = #tpu.pipeline_mode<synchronous>, transform_indices = @transform_1, window_bounds = array<i64: 2, 16>}, {pipeline_mode = #tpu.pipeline_mode<synchronous>, transform_indices = @transform_2, window_bounds = array<i64: 64, 128>}, {pipeline_mode = #tpu.pipeline_mode<synchronous>, transform_indices = @transform_3, window_bounds = array<i64: 16, 128>}, {pipeline_mode = #tpu.pipeline_mode<synchronous>, transform_indices = @transform_4, window_bounds = array<i64: 1, 128>}, {pipeline_mode = #tpu.pipeline_mode<synchronous>, transform_indices = @transform_5, window_bounds = array<i64: 1, 128>}, {pipeline_mode = #tpu.pipeline_mode<synchronous>, transform_indices = @transform_6, window_bounds = array<i64: 1, 128>}, {pipeline_mode = #tpu.pipeline_mode<synchronous>, transform_indices = @transform_7, window_bounds = array<i64: 128, 2048>}, {pipeline_mode = #tpu.pipeline_mode<synchronous>, transform_indices = @transform_8, window_bounds = array<i64: 1, 128>}, {pipeline_mode = #tpu.pipeline_mode<synchronous>, transform_indices = @transform_9, window_bounds = array<i64: 2, 128>}]} {
    %c0 = arith.constant 0 : index
    %c0_0 = arith.constant 0 : index
    %0 = vector.load %arg1[%c0, %c0_0] : memref<32x64xbf16, #tpu.memory_space<vmem>>, vector<32x64xbf16>
    %c0_1 = arith.constant 0 : index
    %c0_2 = arith.constant 0 : index
    %1 = vector.load %arg3[%c0_1, %c0_2] : memref<64x128xbf16, #tpu.memory_space<vmem>>, vector<64x128xbf16>
    %cst = arith.constant dense<0.000000e+00> : vector<32x128xf32>
    %2 = tpu.matmul %0, %1, %cst {dimension_numbers = #tpu.dot_dimension_numbers<[1], [0], [0], [1], [0, 0, 1, 1], [], []>} : vector<32x64xbf16>, vector<64x128xbf16>, vector<32x128xf32> -> vector<32x128xf32>
    %c0_3 = arith.constant 0 : index
    %c0_4 = arith.constant 0 : index
    %3 = vector.load %arg2[%c0_3, %c0_4] : memref<2x16xbf16, #tpu.memory_space<vmem>>, vector<2x16xbf16>
    %c0_5 = arith.constant 0 : index
    %c0_6 = arith.constant 0 : index
    %4 = vector.load %arg4[%c0_5, %c0_6] : memref<16x128xbf16, #tpu.memory_space<vmem>>, vector<16x128xbf16>
    %cst_7 = arith.constant dense<0.000000e+00> : vector<2x128xf32>
    %5 = tpu.matmul %3, %4, %cst_7 {dimension_numbers = #tpu.dot_dimension_numbers<[1], [0], [0], [1], [0, 0, 1, 1], [], []>} : vector<2x16xbf16>, vector<16x128xbf16>, vector<2x128xf32> -> vector<2x128xf32>
    %6 = vector.shape_cast %2 : vector<32x128xf32> to vector<2x16x128xf32>
    %7 = vector.shape_cast %5 : vector<2x128xf32> to vector<2x1x128xf32>
    %8 = vector.broadcast %7 : vector<2x1x128xf32> to vector<2x16x128xf32>
    %9 = arith.addf %6, %8 : vector<2x16x128xf32>
    %10 = vector.shape_cast %9 : vector<2x16x128xf32> to vector<32x128xf32>
    %c0_8 = arith.constant 0 : index
    %c0_9 = arith.constant 0 : index
    %11 = vector.load %arg5[%c0_8, %c0_9] : memref<1x128xf32, #tpu.memory_space<vmem>>, vector<1x128xf32>
    %12 = vector.broadcast %11 : vector<1x128xf32> to vector<32x128xf32>
    %13 = arith.addf %10, %12 : vector<32x128xf32>
    %cst_10 = arith.constant dense<0.000000e+00> : vector<128xf32>
    %14 = vector.multi_reduction <add>, %13, %cst_10 [0] : vector<32x128xf32> to vector<128xf32>
    %15 = vector.shape_cast %14 : vector<128xf32> to vector<1x128xf32>
    %16 = arith.mulf %13, %13 : vector<32x128xf32>
    %cst_11 = arith.constant dense<0.000000e+00> : vector<128xf32>
    %17 = vector.multi_reduction <add>, %16, %cst_11 [0] : vector<32x128xf32> to vector<128xf32>
    %18 = vector.shape_cast %17 : vector<128xf32> to vector<1x128xf32>
    %cst_12 = arith.constant 3.125000e-02 : f32
    %19 = vector.broadcast %cst_12 : f32 to vector<1x128xf32>
    %20 = arith.mulf %15, %19 : vector<1x128xf32>
    %cst_13 = arith.constant 3.125000e-02 : f32
    %21 = vector.broadcast %cst_13 : f32 to vector<1x128xf32>
    %22 = arith.mulf %18, %21 : vector<1x128xf32>
    %23 = arith.mulf %20, %20 : vector<1x128xf32>
    %24 = arith.subf %22, %23 : vector<1x128xf32>
    %cst_14 = arith.constant 9.99999974E-6 : f32
    %25 = vector.broadcast %cst_14 : f32 to vector<1x128xf32>
    %26 = arith.addf %24, %25 : vector<1x128xf32>
    %27 = math.rsqrt %26 : vector<1x128xf32>
    %c0_15 = arith.constant 0 : index
    %c0_16 = arith.constant 0 : index
    %28 = vector.load %arg6[%c0_15, %c0_16] : memref<1x128xf32, #tpu.memory_space<vmem>>, vector<1x128xf32>
    %29 = arith.mulf %27, %28 : vector<1x128xf32>
    %c0_17 = arith.constant 0 : index
    %c0_18 = arith.constant 0 : index
    %30 = vector.load %arg7[%c0_17, %c0_18] : memref<1x128xf32, #tpu.memory_space<vmem>>, vector<1x128xf32>
    %31 = arith.mulf %20, %29 : vector<1x128xf32>
    %32 = arith.subf %30, %31 : vector<1x128xf32>
    %33 = vector.broadcast %29 : vector<1x128xf32> to vector<32x128xf32>
    %34 = arith.mulf %13, %33 : vector<32x128xf32>
    %35 = vector.broadcast %32 : vector<1x128xf32> to vector<32x128xf32>
    %36 = arith.addf %34, %35 : vector<32x128xf32>
    %37 = arith.negf %36 : vector<32x128xf32>
    %38 = math.exp %37 : vector<32x128xf32>
    %cst_19 = arith.constant 1.000000e+00 : f32
    %39 = vector.broadcast %cst_19 : f32 to vector<32x128xf32>
    %40 = arith.addf %39, %38 : vector<32x128xf32>
    %41 = arith.divf %39, %40 : vector<32x128xf32>
    %42 = arith.mulf %36, %41 : vector<32x128xf32>
    %43 = arith.truncf %42 : vector<32x128xf32> to vector<32x128xbf16>
    %c0_20 = arith.constant 0 : index
    %c0_21 = arith.constant 0 : index
    %44 = vector.load %arg8[%c0_20, %c0_21] : memref<128x2048xbf16, #tpu.memory_space<vmem>>, vector<128x2048xbf16>
    %cst_22 = arith.constant dense<0.000000e+00> : vector<32x2048xf32>
    %45 = tpu.matmul %43, %44, %cst_22 {dimension_numbers = #tpu.dot_dimension_numbers<[1], [0], [0], [1], [0, 0, 1, 1], [], []>} : vector<32x128xbf16>, vector<128x2048xbf16>, vector<32x2048xf32> -> vector<32x2048xf32>
    %46 = tpu.iota {dimensions = array<i32: 0>} : vector<32x1xi32>
    %c15_i32 = arith.constant 15 : i32
    %47 = vector.broadcast %c15_i32 : i32 to vector<32x1xi32>
    %48 = arith.andi %46, %47 : vector<32x1xi32>
    %c0_i32 = arith.constant 0 : i32
    %49 = vector.broadcast %c0_i32 : i32 to vector<32x1xi32>
    %50 = arith.cmpi eq, %48, %49 : vector<32x1xi32>
    %51 = vector.extract_strided_slice %45 {offsets = [0, 0], sizes = [32, 128], strides = [1, 1]} : vector<32x2048xf32> to vector<32x128xf32>
    %cst_23 = arith.constant 0.000000e+00 : f32
    %52 = vector.shape_cast %50 : vector<32x1xi1> to vector<32x1xi1>
    %53 = vector.broadcast %52 : vector<32x1xi1> to vector<32x128xi1>
    %54 = vector.broadcast %cst_23 : f32 to vector<32x128xf32>
    %55 = arith.select %53, %51, %54 : vector<32x128xi1>, vector<32x128xf32>
    %c1_i32 = arith.constant 1 : i32
    %56 = vector.broadcast %c1_i32 : i32 to vector<32x1xi32>
    %57 = arith.cmpi eq, %48, %56 : vector<32x1xi32>
    %58 = vector.extract_strided_slice %45 {offsets = [0, 128], sizes = [32, 128], strides = [1, 1]} : vector<32x2048xf32> to vector<32x128xf32>
    %cst_24 = arith.constant 0.000000e+00 : f32
    %59 = vector.shape_cast %57 : vector<32x1xi1> to vector<32x1xi1>
    %60 = vector.broadcast %59 : vector<32x1xi1> to vector<32x128xi1>
    %61 = vector.broadcast %cst_24 : f32 to vector<32x128xf32>
    %62 = arith.select %60, %58, %61 : vector<32x128xi1>, vector<32x128xf32>
    %c2_i32 = arith.constant 2 : i32
    %63 = vector.broadcast %c2_i32 : i32 to vector<32x1xi32>
    %64 = arith.cmpi eq, %48, %63 : vector<32x1xi32>
    %65 = vector.extract_strided_slice %45 {offsets = [0, 256], sizes = [32, 128], strides = [1, 1]} : vector<32x2048xf32> to vector<32x128xf32>
    %cst_25 = arith.constant 0.000000e+00 : f32
    %66 = vector.shape_cast %64 : vector<32x1xi1> to vector<32x1xi1>
    %67 = vector.broadcast %66 : vector<32x1xi1> to vector<32x128xi1>
    %68 = vector.broadcast %cst_25 : f32 to vector<32x128xf32>
    %69 = arith.select %67, %65, %68 : vector<32x128xi1>, vector<32x128xf32>
    %c3_i32 = arith.constant 3 : i32
    %70 = vector.broadcast %c3_i32 : i32 to vector<32x1xi32>
    %71 = arith.cmpi eq, %48, %70 : vector<32x1xi32>
    %72 = vector.extract_strided_slice %45 {offsets = [0, 384], sizes = [32, 128], strides = [1, 1]} : vector<32x2048xf32> to vector<32x128xf32>
    %cst_26 = arith.constant 0.000000e+00 : f32
    %73 = vector.shape_cast %71 : vector<32x1xi1> to vector<32x1xi1>
    %74 = vector.broadcast %73 : vector<32x1xi1> to vector<32x128xi1>
    %75 = vector.broadcast %cst_26 : f32 to vector<32x128xf32>
    %76 = arith.select %74, %72, %75 : vector<32x128xi1>, vector<32x128xf32>
    %c4_i32 = arith.constant 4 : i32
    %77 = vector.broadcast %c4_i32 : i32 to vector<32x1xi32>
    %78 = arith.cmpi eq, %48, %77 : vector<32x1xi32>
    %79 = vector.extract_strided_slice %45 {offsets = [0, 512], sizes = [32, 128], strides = [1, 1]} : vector<32x2048xf32> to vector<32x128xf32>
    %cst_27 = arith.constant 0.000000e+00 : f32
    %80 = vector.shape_cast %78 : vector<32x1xi1> to vector<32x1xi1>
    %81 = vector.broadcast %80 : vector<32x1xi1> to vector<32x128xi1>
    %82 = vector.broadcast %cst_27 : f32 to vector<32x128xf32>
    %83 = arith.select %81, %79, %82 : vector<32x128xi1>, vector<32x128xf32>
    %c5_i32 = arith.constant 5 : i32
    %84 = vector.broadcast %c5_i32 : i32 to vector<32x1xi32>
    %85 = arith.cmpi eq, %48, %84 : vector<32x1xi32>
    %86 = vector.extract_strided_slice %45 {offsets = [0, 640], sizes = [32, 128], strides = [1, 1]} : vector<32x2048xf32> to vector<32x128xf32>
    %cst_28 = arith.constant 0.000000e+00 : f32
    %87 = vector.shape_cast %85 : vector<32x1xi1> to vector<32x1xi1>
    %88 = vector.broadcast %87 : vector<32x1xi1> to vector<32x128xi1>
    %89 = vector.broadcast %cst_28 : f32 to vector<32x128xf32>
    %90 = arith.select %88, %86, %89 : vector<32x128xi1>, vector<32x128xf32>
    %c6_i32 = arith.constant 6 : i32
    %91 = vector.broadcast %c6_i32 : i32 to vector<32x1xi32>
    %92 = arith.cmpi eq, %48, %91 : vector<32x1xi32>
    %93 = vector.extract_strided_slice %45 {offsets = [0, 768], sizes = [32, 128], strides = [1, 1]} : vector<32x2048xf32> to vector<32x128xf32>
    %cst_29 = arith.constant 0.000000e+00 : f32
    %94 = vector.shape_cast %92 : vector<32x1xi1> to vector<32x1xi1>
    %95 = vector.broadcast %94 : vector<32x1xi1> to vector<32x128xi1>
    %96 = vector.broadcast %cst_29 : f32 to vector<32x128xf32>
    %97 = arith.select %95, %93, %96 : vector<32x128xi1>, vector<32x128xf32>
    %c7_i32 = arith.constant 7 : i32
    %98 = vector.broadcast %c7_i32 : i32 to vector<32x1xi32>
    %99 = arith.cmpi eq, %48, %98 : vector<32x1xi32>
    %100 = vector.extract_strided_slice %45 {offsets = [0, 896], sizes = [32, 128], strides = [1, 1]} : vector<32x2048xf32> to vector<32x128xf32>
    %cst_30 = arith.constant 0.000000e+00 : f32
    %101 = vector.shape_cast %99 : vector<32x1xi1> to vector<32x1xi1>
    %102 = vector.broadcast %101 : vector<32x1xi1> to vector<32x128xi1>
    %103 = vector.broadcast %cst_30 : f32 to vector<32x128xf32>
    %104 = arith.select %102, %100, %103 : vector<32x128xi1>, vector<32x128xf32>
    %c8_i32 = arith.constant 8 : i32
    %105 = vector.broadcast %c8_i32 : i32 to vector<32x1xi32>
    %106 = arith.cmpi eq, %48, %105 : vector<32x1xi32>
    %107 = vector.extract_strided_slice %45 {offsets = [0, 1024], sizes = [32, 128], strides = [1, 1]} : vector<32x2048xf32> to vector<32x128xf32>
    %cst_31 = arith.constant 0.000000e+00 : f32
    %108 = vector.shape_cast %106 : vector<32x1xi1> to vector<32x1xi1>
    %109 = vector.broadcast %108 : vector<32x1xi1> to vector<32x128xi1>
    %110 = vector.broadcast %cst_31 : f32 to vector<32x128xf32>
    %111 = arith.select %109, %107, %110 : vector<32x128xi1>, vector<32x128xf32>
    %c9_i32 = arith.constant 9 : i32
    %112 = vector.broadcast %c9_i32 : i32 to vector<32x1xi32>
    %113 = arith.cmpi eq, %48, %112 : vector<32x1xi32>
    %114 = vector.extract_strided_slice %45 {offsets = [0, 1152], sizes = [32, 128], strides = [1, 1]} : vector<32x2048xf32> to vector<32x128xf32>
    %cst_32 = arith.constant 0.000000e+00 : f32
    %115 = vector.shape_cast %113 : vector<32x1xi1> to vector<32x1xi1>
    %116 = vector.broadcast %115 : vector<32x1xi1> to vector<32x128xi1>
    %117 = vector.broadcast %cst_32 : f32 to vector<32x128xf32>
    %118 = arith.select %116, %114, %117 : vector<32x128xi1>, vector<32x128xf32>
    %c10_i32 = arith.constant 10 : i32
    %119 = vector.broadcast %c10_i32 : i32 to vector<32x1xi32>
    %120 = arith.cmpi eq, %48, %119 : vector<32x1xi32>
    %121 = vector.extract_strided_slice %45 {offsets = [0, 1280], sizes = [32, 128], strides = [1, 1]} : vector<32x2048xf32> to vector<32x128xf32>
    %cst_33 = arith.constant 0.000000e+00 : f32
    %122 = vector.shape_cast %120 : vector<32x1xi1> to vector<32x1xi1>
    %123 = vector.broadcast %122 : vector<32x1xi1> to vector<32x128xi1>
    %124 = vector.broadcast %cst_33 : f32 to vector<32x128xf32>
    %125 = arith.select %123, %121, %124 : vector<32x128xi1>, vector<32x128xf32>
    %c11_i32 = arith.constant 11 : i32
    %126 = vector.broadcast %c11_i32 : i32 to vector<32x1xi32>
    %127 = arith.cmpi eq, %48, %126 : vector<32x1xi32>
    %128 = vector.extract_strided_slice %45 {offsets = [0, 1408], sizes = [32, 128], strides = [1, 1]} : vector<32x2048xf32> to vector<32x128xf32>
    %cst_34 = arith.constant 0.000000e+00 : f32
    %129 = vector.shape_cast %127 : vector<32x1xi1> to vector<32x1xi1>
    %130 = vector.broadcast %129 : vector<32x1xi1> to vector<32x128xi1>
    %131 = vector.broadcast %cst_34 : f32 to vector<32x128xf32>
    %132 = arith.select %130, %128, %131 : vector<32x128xi1>, vector<32x128xf32>
    %c12_i32 = arith.constant 12 : i32
    %133 = vector.broadcast %c12_i32 : i32 to vector<32x1xi32>
    %134 = arith.cmpi eq, %48, %133 : vector<32x1xi32>
    %135 = vector.extract_strided_slice %45 {offsets = [0, 1536], sizes = [32, 128], strides = [1, 1]} : vector<32x2048xf32> to vector<32x128xf32>
    %cst_35 = arith.constant 0.000000e+00 : f32
    %136 = vector.shape_cast %134 : vector<32x1xi1> to vector<32x1xi1>
    %137 = vector.broadcast %136 : vector<32x1xi1> to vector<32x128xi1>
    %138 = vector.broadcast %cst_35 : f32 to vector<32x128xf32>
    %139 = arith.select %137, %135, %138 : vector<32x128xi1>, vector<32x128xf32>
    %c13_i32 = arith.constant 13 : i32
    %140 = vector.broadcast %c13_i32 : i32 to vector<32x1xi32>
    %141 = arith.cmpi eq, %48, %140 : vector<32x1xi32>
    %142 = vector.extract_strided_slice %45 {offsets = [0, 1664], sizes = [32, 128], strides = [1, 1]} : vector<32x2048xf32> to vector<32x128xf32>
    %cst_36 = arith.constant 0.000000e+00 : f32
    %143 = vector.shape_cast %141 : vector<32x1xi1> to vector<32x1xi1>
    %144 = vector.broadcast %143 : vector<32x1xi1> to vector<32x128xi1>
    %145 = vector.broadcast %cst_36 : f32 to vector<32x128xf32>
    %146 = arith.select %144, %142, %145 : vector<32x128xi1>, vector<32x128xf32>
    %c14_i32 = arith.constant 14 : i32
    %147 = vector.broadcast %c14_i32 : i32 to vector<32x1xi32>
    %148 = arith.cmpi eq, %48, %147 : vector<32x1xi32>
    %149 = vector.extract_strided_slice %45 {offsets = [0, 1792], sizes = [32, 128], strides = [1, 1]} : vector<32x2048xf32> to vector<32x128xf32>
    %cst_37 = arith.constant 0.000000e+00 : f32
    %150 = vector.shape_cast %148 : vector<32x1xi1> to vector<32x1xi1>
    %151 = vector.broadcast %150 : vector<32x1xi1> to vector<32x128xi1>
    %152 = vector.broadcast %cst_37 : f32 to vector<32x128xf32>
    %153 = arith.select %151, %149, %152 : vector<32x128xi1>, vector<32x128xf32>
    %c15_i32_38 = arith.constant 15 : i32
    %154 = vector.broadcast %c15_i32_38 : i32 to vector<32x1xi32>
    %155 = arith.cmpi eq, %48, %154 : vector<32x1xi32>
    %156 = vector.extract_strided_slice %45 {offsets = [0, 1920], sizes = [32, 128], strides = [1, 1]} : vector<32x2048xf32> to vector<32x128xf32>
    %cst_39 = arith.constant 0.000000e+00 : f32
    %157 = vector.shape_cast %155 : vector<32x1xi1> to vector<32x1xi1>
    %158 = vector.broadcast %157 : vector<32x1xi1> to vector<32x128xi1>
    %159 = vector.broadcast %cst_39 : f32 to vector<32x128xf32>
    %160 = arith.select %158, %156, %159 : vector<32x128xi1>, vector<32x128xf32>
    %161 = arith.addf %55, %62 : vector<32x128xf32>
    %162 = arith.addf %69, %76 : vector<32x128xf32>
    %163 = arith.addf %83, %90 : vector<32x128xf32>
    %164 = arith.addf %97, %104 : vector<32x128xf32>
    %165 = arith.addf %111, %118 : vector<32x128xf32>
    %166 = arith.addf %125, %132 : vector<32x128xf32>
    %167 = arith.addf %139, %146 : vector<32x128xf32>
    %168 = arith.addf %153, %160 : vector<32x128xf32>
    %169 = arith.addf %161, %162 : vector<32x128xf32>
    %170 = arith.addf %163, %164 : vector<32x128xf32>
    %171 = arith.addf %165, %166 : vector<32x128xf32>
    %172 = arith.addf %167, %168 : vector<32x128xf32>
    %173 = arith.addf %169, %170 : vector<32x128xf32>
    %174 = arith.addf %171, %172 : vector<32x128xf32>
    %175 = arith.addf %173, %174 : vector<32x128xf32>
    %176 = vector.shape_cast %175 : vector<32x128xf32> to vector<2x16x128xf32>
    %cst_40 = arith.constant dense<0.000000e+00> : vector<2x128xf32>
    %177 = vector.multi_reduction <add>, %176, %cst_40 [1] : vector<2x16x128xf32> to vector<2x128xf32>
    %c0_41 = arith.constant 0 : index
    %c0_42 = arith.constant 0 : index
    %178 = vector.load %arg9[%c0_41, %c0_42] : memref<1x128xf32, #tpu.memory_space<vmem>>, vector<1x128xf32>
    %179 = vector.broadcast %178 : vector<1x128xf32> to vector<2x128xf32>
    %180 = arith.addf %177, %179 : vector<2x128xf32>
    %c0_43 = arith.constant 0 : index
    %c0_44 = arith.constant 0 : index
    %181 = vector.load %arg10[%c0_43, %c0_44] : memref<2x128xf32, #tpu.memory_space<vmem>>, vector<2x128xf32>
    tpu.vector_store %arg10[%c0_43, %c0_44], %180 {strides = array<i32>} : memref<2x128xf32, #tpu.memory_space<vmem>>, vector<2x128xf32>,
    return
  }
  func.func @transform_0(%arg0: i32) -> (i32, i32) {
    %c0_i32 = arith.constant 0 : i32
    %c0_i32_0 = arith.constant 0 : i32
    %c0_i32_1 = arith.constant 0 : i32
    return %c0_i32, %c0_i32_0 : i32, i32
  }
  func.func @transform_1(%arg0: i32) -> (i32, i32) {
    %c0_i32 = arith.constant 0 : i32
    %c0_i32_0 = arith.constant 0 : i32
    %c0_i32_1 = arith.constant 0 : i32
    return %c0_i32, %c0_i32_0 : i32, i32
  }
  func.func @transform_2(%arg0: i32) -> (i32, i32) {
    %c0_i32 = arith.constant 0 : i32
    %c0_i32_0 = arith.constant 0 : i32
    %c0_i32_1 = arith.constant 0 : i32
    return %c0_i32, %c0_i32_0 : i32, i32
  }
  func.func @transform_3(%arg0: i32) -> (i32, i32) {
    %c0_i32 = arith.constant 0 : i32
    %c0_i32_0 = arith.constant 0 : i32
    %c0_i32_1 = arith.constant 0 : i32
    return %c0_i32, %c0_i32_0 : i32, i32
  }
  func.func @transform_4(%arg0: i32) -> (i32, i32) {
    %c0_i32 = arith.constant 0 : i32
    %c0_i32_0 = arith.constant 0 : i32
    %c0_i32_1 = arith.constant 0 : i32
    return %c0_i32, %c0_i32_0 : i32, i32
  }
  func.func @transform_5(%arg0: i32) -> (i32, i32) {
    %c0_i32 = arith.constant 0 : i32
    %c0_i32_0 = arith.constant 0 : i32
    %c0_i32_1 = arith.constant 0 : i32
    return %c0_i32, %c0_i32_0 : i32, i32
  }
  func.func @transform_6(%arg0: i32) -> (i32, i32) {
    %c0_i32 = arith.constant 0 : i32
    %c0_i32_0 = arith.constant 0 : i32
    %c0_i32_1 = arith.constant 0 : i32
    return %c0_i32, %c0_i32_0 : i32, i32
  }
  func.func @transform_7(%arg0: i32) -> (i32, i32) {
    %c0_i32 = arith.constant 0 : i32
    %c0_i32_0 = arith.constant 0 : i32
    %c0_i32_1 = arith.constant 0 : i32
    return %c0_i32, %c0_i32_0 : i32, i32
  }
  func.func @transform_8(%arg0: i32) -> (i32, i32) {
    %c0_i32 = arith.constant 0 : i32
    %c0_i32_0 = arith.constant 0 : i32
    %c0_i32_1 = arith.constant 0 : i32
    return %c0_i32, %c0_i32_0 : i32, i32
  }
  func.func @transform_9(%arg0: i32) -> (i32, i32) {
    %c0_i32 = arith.constant 0 : i32
    %c0_i32_0 = arith.constant 0 : i32
    %c0_i32_1 = arith.constant 0 : i32
    return %c0_i32, %c0_i32_0 : i32, i32
  }
}

</mosaic_0001>

<llo_original>
// kernel: align_cond_discriminator.1
$region0: #{align_cond_discriminator.1}
  #allocation0 [shape = 'u32[]', space=smem, size = 0x4, offset = 0x4, fixed_abs, tag = 'smem constant byte address 0x4 - core index']
  #allocation1 [shape = 'u32[144,128]{1,0:T(1,128)}', space=vmem, size = 0x12000, scoped, tag = 'internal scratch']
  %s0 = inlined_call_operand.vmem [shape: bf16[32,64], index: 0, kind: input, shape index: {}]
  %s1 = inlined_call_operand.vmem [shape: bf16[2,16], index: 1, kind: input, shape index: {}]
  %s2 = inlined_call_operand.vmem [shape: bf16[64,128], index: 2, kind: input, shape index: {}]
  %s3 = inlined_call_operand.vmem [shape: bf16[16,128], index: 3, kind: input, shape index: {}]
  %s4 = inlined_call_operand.vmem [shape: f32[1,128], index: 4, kind: input, shape index: {}]
  %s5 = inlined_call_operand.vmem [shape: f32[1,128], index: 5, kind: input, shape index: {}]
  %s6 = inlined_call_operand.vmem [shape: f32[1,128], index: 6, kind: input, shape index: {}]
  %s7 = inlined_call_operand.hbm [shape: bf16[128,2048], index: 7, kind: input, shape index: {}]
  %s8 = inlined_call_operand.vmem [shape: f32[1,128], index: 8, kind: input, shape index: {}]
  %s9 = inlined_call_operand.hbm [shape: f32[2,128], index: 9, kind: output, shape index: {}]
  %s10 = sld [smem:[#allocation0]]
  $region50: #{align_cond_discriminator.1} parent=0
    _
  %s12 = ssub.s32 1, %s10
  %s13 = scalar_select 0, %s12, %s10
  $region1: #{align_cond_discriminator.1} parent=0
    #allocation2 [shape = 'u8[524288]{0}', space=vmem, size = 0x80000, scoped, tag = 'input window, operand 7, single buffered']
    #allocation3 [shape = 's32[1]{0}', space=sflag, size = 0x4, scoped, tag = 'scoped memory for align_cond_discriminator.1']
    #allocation4 [shape = 's32[1]{0}', space=sflag, size = 0x4, scoped, tag = 'scoped memory for align_cond_discriminator.1']
    #allocation5 [shape = 'u8[1024]{0}', space=vmem, size = 0x400, scoped, tag = 'output window, operand 0, single buffered']
    %14 = vsyncpa [#allocation3], 0
    %15 = vsyncpa [#allocation4], 0
    // Predicated region
    $region2: #{align_cond_discriminator.1} parent=1 // pred_check
      _
    $region3: #{align_cond_discriminator.1} parent=1 // pred_check_branch
      %17 = sbr.rel (0) target = $region5
    $region4: #{align_cond_discriminator.1} parent=1 // pred_region
      _
    $region5: #{align_cond_discriminator.1} parent=1 // pred_fallthru
      _
    // Predicated region
    $region6: #{align_cond_discriminator.1} parent=1 // pred_check
      _
    $region7: #{align_cond_discriminator.1} parent=1 // pred_check_branch
      %19 = sbr.rel (0) target = $region9
    $region8: #{align_cond_discriminator.1} parent=1 // pred_region
      _
    $region9: #{align_cond_discriminator.1} parent=1 // pred_fallthru
      _
    // Predicated region
    $region10: #{align_cond_discriminator.1} parent=1 // pred_check
      _
    $region11: #{align_cond_discriminator.1} parent=1 // pred_check_branch
      %21 = sbr.rel (0) target = $region13
    $region12: #{align_cond_discriminator.1} parent=1 // pred_region
      _
    $region13: #{align_cond_discriminator.1} parent=1 // pred_fallthru
      _
    // Predicated region
    $region14: #{align_cond_discriminator.1} parent=1 // pred_check
      _
    $region15: #{align_cond_discriminator.1} parent=1 // pred_check_branch
      %23 = sbr.rel (0) target = $region17
    $region16: #{align_cond_discriminator.1} parent=1 // pred_region
      _
    $region17: #{align_cond_discriminator.1} parent=1 // pred_fallthru
      _
    // Predicated region
    $region18: #{align_cond_discriminator.1} parent=1 // pred_check
      _
    $region19: #{align_cond_discriminator.1} parent=1 // pred_check_branch
      %25 = sbr.rel (0) target = $region21
    $region20: #{align_cond_discriminator.1} parent=1 // pred_region
      _
    $region21: #{align_cond_discriminator.1} parent=1 // pred_fallthru
      _
    // Predicated region
    $region22: #{align_cond_discriminator.1} parent=1 // pred_check
      _
    $region23: #{align_cond_discriminator.1} parent=1 // pred_check_branch
      %27 = sbr.rel (0) target = $region25
    $region24: #{align_cond_discriminator.1} parent=1 // pred_region
      _
    $region25: #{align_cond_discriminator.1} parent=1 // pred_fallthru
      _
    // Predicated region
    $region26: #{align_cond_discriminator.1} parent=1 // pred_check
      _
    $region27: #{align_cond_discriminator.1} parent=1 // pred_check_branch
      %29 = sbr.rel (0) target = $region29
    $region28: #{align_cond_discriminator.1} parent=1 // pred_region
      _
    $region29: #{align_cond_discriminator.1} parent=1 // pred_fallthru
      _
    // Predicated region
    $region30: #{align_cond_discriminator.1} parent=1 // pred_check
      _
    $region31: #{align_cond_discriminator.1} parent=1 // pred_check_branch
      %31 = sbr.rel (0) target = $region33
    $region32: #{align_cond_discriminator.1} parent=1 // pred_region
      %s33 = ssub.s32 16384, 16384
      %34 = vsyncadd [#allocation3], %s33
      %s35 = sshll.u32 [#allocation2], 4
      %s36 = int_to_ptr.vmem [resolvable:$true] %s35
      %41 = dma.hbm_to_vmem [thread:$0]  %s7, 16384, %s36, [#allocation3], 1024, 1024, 64
    $region33: #{align_cond_discriminator.1} parent=1 // pred_fallthru
      _
    // Predicated region
    $region34: #{align_cond_discriminator.1} parent=1 // pred_check
      _
    $region35: #{align_cond_discriminator.1} parent=1 // pred_check_branch
      %43 = sbr.rel (0) target = $region37
    $region36: #{align_cond_discriminator.1} parent=1 // pred_region
      _
    $region37: #{align_cond_discriminator.1} parent=1 // pred_fallthru
      _
    // Predicated region
    $region38: #{align_cond_discriminator.1} parent=1 // pred_check
      _
    $region39: #{align_cond_discriminator.1} parent=1 // pred_check_branch
      %45 = sbr.rel (0) target = $region41
    $region40: #{align_cond_discriminator.1} parent=1 // pred_region
      %46 = dma.done [#allocation3], 16384
    $region41: #{align_cond_discriminator.1} parent=1 // pred_fallthru
      _
    %v48 = vld [vmem:[%s0] sm:$0xf]
    %v49 = vld [vmem:[%s0 + $0x4] sm:$0xf]
    %v50 = vld [vmem:[%s0 + $0x8] sm:$0xf]
    %v51 = vld [vmem:[%s0 + $0xc] sm:$0xf]
    %v52 = vld [vmem:[%s2] sm:$0xf]
    %v53 = vld [vmem:[%s2 + $0x4] sm:$0xf]
    %v54 = vld [vmem:[%s2 + $0x8] sm:$0xf]
    %v55 = vld [vmem:[%s2 + $0xc] sm:$0xf]
    %v56 = vld [vmem:[%s2 + $0x10] sm:$0xf]
    %v57 = vld [vmem:[%s2 + $0x14] sm:$0xf]
    %v58 = vld [vmem:[%s2 + $0x18] sm:$0xf]
    %v59 = vld [vmem:[%s2 + $0x1c] sm:$0xf]
    %v64 = vunpack.c.l.b16 %v48
    %v65 = vunpack.c.l.b16 %v49
    %v66 = vunpack.c.l.b16 %v50
    %v67 = vunpack.c.l.b16 %v51
    %v68 = vpack.c.b16 %v65, %v64
    %v69 = vpack.c.b16 %v67, %v66
    %v78 = vunpack.c.l.b16 %v52
    %v79 = vunpack.c.l.b16 %v53
    %v80 = vunpack.c.l.b16 %v54
    %v81 = vunpack.c.l.b16 %v55
    %v82 = vunpack.c.l.b16 %v56
    %v83 = vunpack.c.l.b16 %v57
    %v84 = vunpack.c.l.b16 %v58
    %v85 = vunpack.c.l.b16 %v59
    %v86 = vpack.c.b16 %v79, %v78
    %v87 = vpack.c.b16 %v81, %v80
    %v88 = vpack.c.b16 %v83, %v82
    %v89 = vpack.c.b16 %v85, %v84
    %vm94 = vcmask 523264
    %v96 = vsel %vm94, %v68, 0
    %v99 = vsel %vm94, %v69, 0
    %101 = vmatprep.subr.bf16.mxu0 0
    %102 = vmatpush1.bf16.msra.mxu0 0
    %103 = vmatprep.subr.bf16.mxu0 0
    %104 = vmatpush1.bf16.msra.mxu0 0
    %105 = vmatprep.subr.bf16.mxu0 0
    %106 = vmatpush1.bf16.msra.mxu0 0
    %107 = vmatprep.subr.bf16.mxu0 0
    %108 = vmatpush1.bf16.msra.mxu0 0
    %109 = vmatprep.subr.bf16.mxu0 0
    %110 = vmatpush1.bf16.msra.mxu0 %v89
    %111 = vmatprep.subr.bf16.mxu0 0
    %112 = vmatpush1.bf16.msra.mxu0 %v88
    %113 = vmatprep.subr.bf16.mxu0 0
    %114 = vmatpush1.bf16.msra.mxu0 %v87
    %115 = vmatprep.subr.bf16.mxu0 0
    %116 = vmatpush1.bf16.msra.mxu0 %v86
    %117 = vmatprep.subr.bf16.mxu0 0
    %118 = vmatpush2.bf16.msra.mxu0 0
    %119 = vmatprep.subr.bf16.mxu0 0
    %120 = vmatpush2.bf16.msra.mxu0 0
    %121 = vmatprep.subr.bf16.mxu0 0
    %122 = vmatpush2.bf16.msra.mxu0 0
    %123 = vmatprep.subr.bf16.mxu0 0
    %124 = vmatpush2.bf16.msra.mxu0 0
    %125 = vmatprep.subr.bf16.mxu0 0
    %126 = vmatpush2.bf16.msra.mxu0 0
    %127 = vmatprep.subr.bf16.mxu0 0
    %128 = vmatpush2.bf16.msra.mxu0 0
    %129 = vmatprep.subr.bf16.mxu0 0
    %130 = vmatpush2.bf16.msra.mxu0 0
    %131 = vmatprep.subr.bf16.mxu0 0
    %132 = vmatpush2.bf16.msra.mxu0 0
    %133 = vmatprep.mubr.bf16.mxu0 0
    %134 = vmatmul.mubr.bf16.gmra.mxu0 %v96
    %v135 = vpop.f32.mrf.mxu0
    %v136 = vadd.f32 0.0, %v135
    %v137 = vpop.f32.mrf.mxu0
    %v138 = vpop.f32.mrf.mxu0
    %v139 = vadd.f32 0.0, %v138
    %v140 = vpop.f32.mrf.mxu0
    %141 = vmatprep.mubr.bf16.mxu0 0
    %142 = vmatmul.mubr.bf16.gmra.mxu0 %v99
    %v143 = vpop.f32.mrf.mxu0
    %v144 = vadd.f32 0.0, %v143
    %v145 = vpop.f32.mrf.mxu0
    %v146 = vpop.f32.mrf.mxu0
    %v147 = vadd.f32 0.0, %v146
    %v148 = vpop.f32.mrf.mxu0
    %149 = vdwg.mxu0
    %v150 = vld [vmem:[%s1] sm:$0x1]
    %v151 = vld [vmem:[%s3] sm:$0xf]
    %v152 = vld [vmem:[%s3 + $0x4] sm:$0xf]
    %v155 = vunpack.c.l.b16 %v151
    %v156 = vunpack.c.l.b16 %v152
    %v157 = vpack.c.b16 %v156, %v155
    %vm159 = vcmask 130048
    %v161 = vsel %vm159, %v150, 0
    %163 = vmatprep.subr.bf16.mxu0 0
    %164 = vmatpush1.bf16.msra.mxu0 0
    %165 = vmatprep.subr.bf16.mxu0 0
    %166 = vmatpush1.bf16.msra.mxu0 0
    %167 = vmatprep.subr.bf16.mxu0 0
    %168 = vmatpush1.bf16.msra.mxu0 0
    %169 = vmatprep.subr.bf16.mxu0 0
    %170 = vmatpush1.bf16.msra.mxu0 0
    %171 = vmatprep.subr.bf16.mxu0 0
    %172 = vmatpush1.bf16.msra.mxu0 0
    %173 = vmatprep.subr.bf16.mxu0 0
    %174 = vmatpush1.bf16.msra.mxu0 0
    %175 = vmatprep.subr.bf16.mxu0 0
    %176 = vmatpush1.bf16.msra.mxu0 0
    %177 = vmatprep.subr.bf16.mxu0 0
    %178 = vmatpush1.bf16.msra.mxu0 %v157
    %179 = vmatprep.subr.bf16.mxu0 0
    %180 = vmatpush2.bf16.msra.mxu0 0
    %181 = vmatprep.subr.bf16.mxu0 0
    %182 = vmatpush2.bf16.msra.mxu0 0
    %183 = vmatprep.subr.bf16.mxu0 0
    %184 = vmatpush2.bf16.msra.mxu0 0
    %185 = vmatprep.subr.bf16.mxu0 0
    %186 = vmatpush2.bf16.msra.mxu0 0
    %187 = vmatprep.subr.bf16.mxu0 0
    %188 = vmatpush2.bf16.msra.mxu0 0
    %189 = vmatprep.subr.bf16.mxu0 0
    %190 = vmatpush2.bf16.msra.mxu0 0
    %191 = vmatprep.subr.bf16.mxu0 0
    %192 = vmatpush2.bf16.msra.mxu0 0
    %193 = vmatprep.subr.bf16.mxu0 0
    %194 = vmatpush2.bf16.msra.mxu0 0
    %195 = vmatprep.mubr.bf16.mxu0 0
    %196 = vmatmul.mubr.bf16.gmra.mxu0 %v161
    %v197 = vpop.f32.mrf.mxu0
    %v198 = vadd.f32 0.0, %v197
    %v199 = vpop.f32.mrf.mxu0
    %v200 = vpop.f32.mrf.mxu0
    %v201 = vpop.f32.mrf.mxu0
    %202 = vdwg.mxu0
    %v205 = vunpack.c.l.s4 1966171168
    %v206 = vunpack.c.0.s8 %v205
    %v207 = vlaneseq
    %v208 = vshrl.u32 %v207, 7
    %v209 = vsub.s32 %v206, %v208
    %v210 = vrot.slane %v198, %v209
    %v211 = vcombine.high %v210, %v210
    %v213 = vunpack.c.l.s4 1966171168
    %v214 = vunpack.c.0.s8 %v213
    %v215 = vlaneseq
    %v216 = vshrl.u32 %v215, 7
    %v217 = vsub.s32 %v214, %v216
    %v218 = vrot.slane %v210, %v217
    %v220 = vunpack.c.l.s4 1966171168
    %v221 = vunpack.c.0.s8 %v220
    %v222 = vlaneseq
    %v223 = vshrl.u32 %v222, 7
    %v224 = vsub.s32 %v221, %v223
    %v225 = vrot.slane %v211, %v224
    %v226 = vlaneseq
    %v227 = vshrl.u32 %v226, 7
    %v228 = vsub.s32 0, %v227
    %v229 = vrot.slane %v218, %v228
    %v230 = vlaneseq
    %v231 = vshrl.u32 %v230, 7
    %v232 = vsub.s32 0, %v231
    %v233 = vrot.slane %v225, %v232
    %v236 = vadd.f32 %v136, %v229
    %v237 = vadd.f32 %v139, %v229
    %v238 = vadd.f32 %v144, %v233
    %v239 = vadd.f32 %v147, %v233
    %v240 = vld [vmem:[%s4] sm:$0x1]
    %v242 = vlaneseq
    %v243 = vshrl.u32 %v242, 7
    %v244 = vsub.s32 0, %v243
    %v245 = vrot.slane %v240, %v244
    %v247 = vadd.f32 %v236, %v245
    %v248 = vadd.f32 %v237, %v245
    %v249 = vadd.f32 %v238, %v245
    %v250 = vadd.f32 %v239, %v245
    %v251 = vadd.f32 %v247, %v248
    %v252 = vadd.f32 %v251, %v249
    %v253 = vadd.f32 %v252, %v250
    %v254 = vrot.slane %v253, 4
    %v255 = vadd.f32 %v253, %v254
    %v256 = vrot.slane %v255, 2
    %v257 = vadd.f32 %v255, %v256
    %v258 = vrot.slane %v257, 1
    %v259 = vadd.f32 %v257, %v258
    %v260 = vmul.f32 %v247, %v247
    %v261 = vmul.f32 %v248, %v248
    %v262 = vmul.f32 %v249, %v249
    %v263 = vmul.f32 %v250, %v250
    %v264 = vadd.f32 %v260, %v261
    %v265 = vadd.f32 %v264, %v262
    %v266 = vadd.f32 %v265, %v263
    %v267 = vrot.slane %v266, 4
    %v268 = vadd.f32 %v266, %v267
    %v269 = vrot.slane %v268, 2
    %v270 = vadd.f32 %v268, %v269
    %v271 = vrot.slane %v270, 1
    %v272 = vadd.f32 %v270, %v271
    %v273 = vmul.f32 %v259, 0.03125
    %v274 = vmul.f32 %v272, 0.03125
    %v275 = vmul.f32 %v273, %v273
    %v276 = vsub.f32 %v274, %v275
    %v277 = vadd.f32 %v276, 1e-05
    %v278 = vrsqrt.pop %v277
    %v279 = vld [vmem:[%s5] sm:$0x1]
    %v280 = vmul.f32 %v278, %v279
    %v281 = vld [vmem:[%s6] sm:$0x1]
    %v282 = vmul.f32 %v273, %v280
    %v283 = vsub.f32 %v281, %v282
    %v284 = vlaneseq
    %v285 = vshrl.u32 %v284, 7
    %v286 = vsub.s32 0, %v285
    %v287 = vrot.slane %v280, %v286
    %v288 = vmul.f32 %v247, %v287
    %v289 = vmul.f32 %v248, %v287
    %v290 = vmul.f32 %v249, %v287
    %v291 = vmul.f32 %v250, %v287
    %v293 = vlaneseq
    %v294 = vshrl.u32 %v293, 7
    %v295 = vsub.s32 0, %v294
    %v296 = vrot.slane %v283, %v295
    %v298 = vadd.f32 %v288, %v296
    %v299 = vadd.f32 %v289, %v296
    %v300 = vadd.f32 %v290, %v296
    %v301 = vadd.f32 %v291, %v296
    %v302 = vxor.u32 %v298, 2147483648
    %v303 = vxor.u32 %v299, 2147483648
    %v304 = vxor.u32 %v300, 2147483648
    %v305 = vxor.u32 %v301, 2147483648
    %v306 = vmul.f32 %v302, 1.442695
    %v307 = vpow.pop %v306
    %v308 = vmul.f32 %v303, 1.442695
    %v309 = vpow.pop %v308
    %v310 = vmul.f32 %v304, 1.442695
    %v311 = vpow.pop %v310
    %v312 = vmul.f32 %v305, 1.442695
    %v313 = vpow.pop %v312
    %v314 = vadd.f32 %v307, 1.0
    %v315 = vadd.f32 %v309, 1.0
    %v316 = vadd.f32 %v311, 1.0
    %v317 = vadd.f32 %v313, 1.0
    %v318 = vrcp.pop %v314
    %v319 = vmul.f32 1.0, %v318
    %v320 = vrcp.pop %v315
    %v321 = vmul.f32 1.0, %v320
    %v322 = vrcp.pop %v316
    %v323 = vmul.f32 1.0, %v322
    %v324 = vrcp.pop %v317
    %v325 = vmul.f32 1.0, %v324
    %v326 = vmul.f32 %v298, %v319
    %v327 = vmul.f32 %v299, %v321
    %v328 = vmul.f32 %v300, %v323
    %v329 = vmul.f32 %v301, %v325
    %v330 = vpack.c.bf16 %v327, %v326
    %v331 = vpack.c.bf16 %v329, %v328
    %v332 = vld [vmem:[#allocation2] sm:$0xff]
    %v333 = vld [vmem:[#allocation2 + $0x8] sm:$0xff]
    %v334 = vld [vmem:[#allocation2 + $0x10] sm:$0xff]
    %v335 = vld [vmem:[#allocation2 + $0x18] sm:$0xff]
    %v336 = vld [vmem:[#allocation2 + $0x20] sm:$0xff]
    %v337 = vld [vmem:[#allocation2 + $0x28] sm:$0xff]
    %v338 = vld [vmem:[#allocation2 + $0x30] sm:$0xff]
    %v339 = vld [vmem:[#allocation2 + $0x38] sm:$0xff]
    %v340 = vld [vmem:[#allocation2 + $0x40] sm:$0xff]
    %v341 = vld [vmem:[#allocation2 + $0x48] sm:$0xff]
    %v342 = vld [vmem:[#allocation2 + $0x50] sm:$0xff]
    %v343 = vld [vmem:[#allocation2 + $0x58] sm:$0xff]
    %v344 = vld [vmem:[#allocation2 + $0x60] sm:$0xff]
    %v345 = vld [vmem:[#allocation2 + $0x68] sm:$0xff]
    %v346 = vld [vmem:[#allocation2 + $0x70] sm:$0xff]
    %v347 = vld [vmem:[#allocation2 + $0x78] sm:$0xff]
    %v348 = vld [vmem:[#allocation2 + $0x80] sm:$0xff]
    %v349 = vld [vmem:[#allocation2 + $0x88] sm:$0xff]
    %v350 = vld [vmem:[#allocation2 + $0x90] sm:$0xff]
    %v351 = vld [vmem:[#allocation2 + $0x98] sm:$0xff]
    %v352 = vld [vmem:[#allocation2 + $0xa0] sm:$0xff]
    %v353 = vld [vmem:[#allocation2 + $0xa8] sm:$0xff]
    %v354 = vld [vmem:[#allocation2 + $0xb0] sm:$0xff]
    %v355 = vld [vmem:[#allocation2 + $0xb8] sm:$0xff]
    %v356 = vld [vmem:[#allocation2 + $0xc0] sm:$0xff]
    %v357 = vld [vmem:[#allocation2 + $0xc8] sm:$0xff]
    %v358 = vld [vmem:[#allocation2 + $0xd0] sm:$0xff]
    %v359 = vld [vmem:[#allocation2 + $0xd8] sm:$0xff]
    %v360 = vld [vmem:[#allocation2 + $0xe0] sm:$0xff]
    %v361 = vld [vmem:[#allocation2 + $0xe8] sm:$0xff]
    %v362 = vld [vmem:[#allocation2 + $0xf0] sm:$0xff]
    %v363 = vld [vmem:[#allocation2 + $0xf8] sm:$0xff]
    %v364 = vld [vmem:[#allocation2 + $0x100] sm:$0xff]
    %v365 = vld [vmem:[#allocation2 + $0x108] sm:$0xff]
    %v366 = vld [vmem:[#allocation2 + $0x110] sm:$0xff]
    %v367 = vld [vmem:[#allocation2 + $0x118] sm:$0xff]
    %v368 = vld [vmem:[#allocation2 + $0x120] sm:$0xff]
    %v369 = vld [vmem:[#allocation2 + $0x128] sm:$0xff]
    %v370 = vld [vmem:[#allocation2 + $0x130] sm:$0xff]
    %v371 = vld [vmem:[#allocation2 + $0x138] sm:$0xff]
    %v372 = vld [vmem:[#allocation2 + $0x140] sm:$0xff]
    %v373 = vld [vmem:[#allocation2 + $0x148] sm:$0xff]
    %v374 = vld [vmem:[#allocation2 + $0x150] sm:$0xff]
    %v375 = vld [vmem:[#allocation2 + $0x158] sm:$0xff]
    %v376 = vld [vmem:[#allocation2 + $0x160] sm:$0xff]
    %v377 = vld [vmem:[#allocation2 + $0x168] sm:$0xff]
    %v378 = vld [vmem:[#allocation2 + $0x170] sm:$0xff]
    %v379 = vld [vmem:[#allocation2 + $0x178] sm:$0xff]
    %v380 = vld [vmem:[#allocation2 + $0x180] sm:$0xff]
    %v381 = vld [vmem:[#allocation2 + $0x188] sm:$0xff]
    %v382 = vld [vmem:[#allocation2 + $0x190] sm:$0xff]
    %v383 = vld [vmem:[#allocation2 + $0x198] sm:$0xff]
    %v384 = vld [vmem:[#allocation2 + $0x1a0] sm:$0xff]
    %v385 = vld [vmem:[#allocation2 + $0x1a8] sm:$0xff]
    %v386 = vld [vmem:[#allocation2 + $0x1b0] sm:$0xff]
    %v387 = vld [vmem:[#allocation2 + $0x1b8] sm:$0xff]
    %v388 = vld [vmem:[#allocation2 + $0x1c0] sm:$0xff]
    %v389 = vld [vmem:[#allocation2 + $0x1c8] sm:$0xff]
    %v390 = vld [vmem:[#allocation2 + $0x1d0] sm:$0xff]
    %v391 = vld [vmem:[#allocation2 + $0x1d8] sm:$0xff]
    %v392 = vld [vmem:[#allocation2 + $0x1e0] sm:$0xff]
    %v393 = vld [vmem:[#allocation2 + $0x1e8] sm:$0xff]
    %v394 = vld [vmem:[#allocation2 + $0x1f0] sm:$0xff]
    %v395 = vld [vmem:[#allocation2 + $0x1f8] sm:$0xff]
    %v396 = vld [vmem:[#allocation2 + $0x200] sm:$0xff]
    %v397 = vld [vmem:[#allocation2 + $0x208] sm:$0xff]
    %v398 = vld [vmem:[#allocation2 + $0x210] sm:$0xff]
    %v399 = vld [vmem:[#allocation2 + $0x218] sm:$0xff]
    %v400 = vld [vmem:[#allocation2 + $0x220] sm:$0xff]
    %v401 = vld [vmem:[#allocation2 + $0x228] sm:$0xff]
    %v402 = vld [vmem:[#allocation2 + $0x230] sm:$0xff]
    %v403 = vld [vmem:[#allocation2 + $0x238] sm:$0xff]
    %v404 = vld [vmem:[#allocation2 + $0x240] sm:$0xff]
    %v405 = vld [vmem:[#allocation2 + $0x248] sm:$0xff]
    %v406 = vld [vmem:[#allocation2 + $0x250] sm:$0xff]
    %v407 = vld [vmem:[#allocation2 + $0x258] sm:$0xff]
    %v408 = vld [vmem:[#allocation2 + $0x260] sm:$0xff]
    %v409 = vld [vmem:[#allocation2 + $0x268] sm:$0xff]
    %v410 = vld [vmem:[#allocation2 + $0x270] sm:$0xff]
    %v411 = vld [vmem:[#allocation2 + $0x278] sm:$0xff]
    %v412 = vld [vmem:[#allocation2 + $0x280] sm:$0xff]
    %v413 = vld [vmem:[#allocation2 + $0x288] sm:$0xff]
    %v414 = vld [vmem:[#allocation2 + $0x290] sm:$0xff]
    %v415 = vld [vmem:[#allocation2 + $0x298] sm:$0xff]
    %v416 = vld [vmem:[#allocation2 + $0x2a0] sm:$0xff]
    %v417 = vld [vmem:[#allocation2 + $0x2a8] sm:$0xff]
    %v418 = vld [vmem:[#allocation2 + $0x2b0] sm:$0xff]
    %v419 = vld [vmem:[#allocation2 + $0x2b8] sm:$0xff]
    %v420 = vld [vmem:[#allocation2 + $0x2c0] sm:$0xff]
    %v421 = vld [vmem:[#allocation2 + $0x2c8] sm:$0xff]
    %v422 = vld [vmem:[#allocation2 + $0x2d0] sm:$0xff]
    %v423 = vld [vmem:[#allocation2 + $0x2d8] sm:$0xff]
    %v424 = vld [vmem:[#allocation2 + $0x2e0] sm:$0xff]
    %v425 = vld [vmem:[#allocation2 + $0x2e8] sm:$0xff]
    %v426 = vld [vmem:[#allocation2 + $0x2f0] sm:$0xff]
    %v427 = vld [vmem:[#allocation2 + $0x2f8] sm:$0xff]
    %v428 = vld [vmem:[#allocation2 + $0x300] sm:$0xff]
    %v429 = vld [vmem:[#allocation2 + $0x308] sm:$0xff]
    %v430 = vld [vmem:[#allocation2 + $0x310] sm:$0xff]
    %v431 = vld [vmem:[#allocation2 + $0x318] sm:$0xff]
    %v432 = vld [vmem:[#allocation2 + $0x320] sm:$0xff]
    %v433 = vld [vmem:[#allocation2 + $0x328] sm:$0xff]
    %v434 = vld [vmem:[#allocation2 + $0x330] sm:$0xff]
    %v435 = vld [vmem:[#allocation2 + $0x338] sm:$0xff]
    %v436 = vld [vmem:[#allocation2 + $0x340] sm:$0xff]
    %v437 = vld [vmem:[#allocation2 + $0x348] sm:$0xff]
    %v438 = vld [vmem:[#allocation2 + $0x350] sm:$0xff]
    %v439 = vld [vmem:[#allocation2 + $0x358] sm:$0xff]
    %v440 = vld [vmem:[#allocation2 + $0x360] sm:$0xff]
    %v441 = vld [vmem:[#allocation2 + $0x368] sm:$0xff]
    %v442 = vld [vmem:[#allocation2 + $0x370] sm:$0xff]
    %v443 = vld [vmem:[#allocation2 + $0x378] sm:$0xff]
    %v444 = vld [vmem:[#allocation2 + $0x380] sm:$0xff]
    %v445 = vld [vmem:[#allocation2 + $0x388] sm:$0xff]
    %v446 = vld [vmem:[#allocation2 + $0x390] sm:$0xff]
    %v447 = vld [vmem:[#allocation2 + $0x398] sm:$0xff]
    %v448 = vld [vmem:[#allocation2 + $0x3a0] sm:$0xff]
    %v449 = vld [vmem:[#allocation2 + $0x3a8] sm:$0xff]
    %v450 = vld [vmem:[#allocation2 + $0x3b0] sm:$0xff]
    %v451 = vld [vmem:[#allocation2 + $0x3b8] sm:$0xff]
    %v452 = vld [vmem:[#allocation2 + $0x3c0] sm:$0xff]
    %v453 = vld [vmem:[#allocation2 + $0x3c8] sm:$0xff]
    %v454 = vld [vmem:[#allocation2 + $0x3d0] sm:$0xff]
    %v455 = vld [vmem:[#allocation2 + $0x3d8] sm:$0xff]
    %v456 = vld [vmem:[#allocation2 + $0x3e0] sm:$0xff]
    %v457 = vld [vmem:[#allocation2 + $0x3e8] sm:$0xff]
    %v458 = vld [vmem:[#allocation2 + $0x3f0] sm:$0xff]
    %v459 = vld [vmem:[#allocation2 + $0x3f8] sm:$0xff]
    %v588 = vunpack.c.l.b16 %v332
    %v589 = vunpack.c.h.b16 %v332
    %v590 = vunpack.c.l.b16 %v333
    %v591 = vunpack.c.h.b16 %v333
    %v592 = vunpack.c.l.b16 %v334
    %v593 = vunpack.c.h.b16 %v334
    %v594 = vunpack.c.l.b16 %v335
    %v595 = vunpack.c.h.b16 %v335
    %v596 = vunpack.c.l.b16 %v336
    %v597 = vunpack.c.h.b16 %v336
    %v598 = vunpack.c.l.b16 %v337
    %v599 = vunpack.c.h.b16 %v337
    %v600 = vunpack.c.l.b16 %v338
    %v601 = vunpack.c.h.b16 %v338
    %v602 = vunpack.c.l.b16 %v339
    %v603 = vunpack.c.h.b16 %v339
    %v604 = vunpack.c.l.b16 %v340
    %v605 = vunpack.c.h.b16 %v340
    %v606 = vunpack.c.l.b16 %v341
    %v607 = vunpack.c.h.b16 %v341
    %v608 = vunpack.c.l.b16 %v342
    %v609 = vunpack.c.h.b16 %v342
    %v610 = vunpack.c.l.b16 %v343
    %v611 = vunpack.c.h.b16 %v343
    %v612 = vunpack.c.l.b16 %v344
    %v613 = vunpack.c.h.b16 %v344
    %v614 = vunpack.c.l.b16 %v345
    %v615 = vunpack.c.h.b16 %v345
    %v616 = vunpack.c.l.b16 %v346
    %v617 = vunpack.c.h.b16 %v346
    %v618 = vunpack.c.l.b16 %v347
    %v619 = vunpack.c.h.b16 %v347
    %v620 = vunpack.c.l.b16 %v348
    %v621 = vunpack.c.h.b16 %v348
    %v622 = vunpack.c.l.b16 %v349
    %v623 = vunpack.c.h.b16 %v349
    %v624 = vunpack.c.l.b16 %v350
    %v625 = vunpack.c.h.b16 %v350
    %v626 = vunpack.c.l.b16 %v351
    %v627 = vunpack.c.h.b16 %v351
    %v628 = vunpack.c.l.b16 %v352
    %v629 = vunpack.c.h.b16 %v352
    %v630 = vunpack.c.l.b16 %v353
    %v631 = vunpack.c.h.b16 %v353
    %v632 = vunpack.c.l.b16 %v354
    %v633 = vunpack.c.h.b16 %v354
    %v634 = vunpack.c.l.b16 %v355
    %v635 = vunpack.c.h.b16 %v355
    %v636 = vunpack.c.l.b16 %v356
    %v637 = vunpack.c.h.b16 %v356
    %v638 = vunpack.c.l.b16 %v357
    %v639 = vunpack.c.h.b16 %v357
    %v640 = vunpack.c.l.b16 %v358
    %v641 = vunpack.c.h.b16 %v358
    %v642 = vunpack.c.l.b16 %v359
    %v643 = vunpack.c.h.b16 %v359
    %v644 = vunpack.c.l.b16 %v360
    %v645 = vunpack.c.h.b16 %v360
    %v646 = vunpack.c.l.b16 %v361
    %v647 = vunpack.c.h.b16 %v361
    %v648 = vunpack.c.l.b16 %v362
    %v649 = vunpack.c.h.b16 %v362
    %v650 = vunpack.c.l.b16 %v363
    %v651 = vunpack.c.h.b16 %v363
    %v652 = vunpack.c.l.b16 %v364
    %v653 = vunpack.c.h.b16 %v364
    %v654 = vunpack.c.l.b16 %v365
    %v655 = vunpack.c.h.b16 %v365
    %v656 = vunpack.c.l.b16 %v366
    %v657 = vunpack.c.h.b16 %v366
    %v658 = vunpack.c.l.b16 %v367
    %v659 = vunpack.c.h.b16 %v367
    %v660 = vunpack.c.l.b16 %v368
    %v661 = vunpack.c.h.b16 %v368
    %v662 = vunpack.c.l.b16 %v369
    %v663 = vunpack.c.h.b16 %v369
    %v664 = vunpack.c.l.b16 %v370
    %v665 = vunpack.c.h.b16 %v370
    %v666 = vunpack.c.l.b16 %v371
    %v667 = vunpack.c.h.b16 %v371
    %v668 = vunpack.c.l.b16 %v372
    %v669 = vunpack.c.h.b16 %v372
    %v670 = vunpack.c.l.b16 %v373
    %v671 = vunpack.c.h.b16 %v373
    %v672 = vunpack.c.l.b16 %v374
    %v673 = vunpack.c.h.b16 %v374
    %v674 = vunpack.c.l.b16 %v375
    %v675 = vunpack.c.h.b16 %v375
    %v676 = vunpack.c.l.b16 %v376
    %v677 = vunpack.c.h.b16 %v376
    %v678 = vunpack.c.l.b16 %v377
    %v679 = vunpack.c.h.b16 %v377
    %v680 = vunpack.c.l.b16 %v378
    %v681 = vunpack.c.h.b16 %v378
    %v682 = vunpack.c.l.b16 %v379
    %v683 = vunpack.c.h.b16 %v379
    %v684 = vunpack.c.l.b16 %v380
    %v685 = vunpack.c.h.b16 %v380
    %v686 = vunpack.c.l.b16 %v381
    %v687 = vunpack.c.h.b16 %v381
    %v688 = vunpack.c.l.b16 %v382
    %v689 = vunpack.c.h.b16 %v382
    %v690 = vunpack.c.l.b16 %v383
    %v691 = vunpack.c.h.b16 %v383
    %v692 = vunpack.c.l.b16 %v384
    %v693 = vunpack.c.h.b16 %v384
    %v694 = vunpack.c.l.b16 %v385
    %v695 = vunpack.c.h.b16 %v385
    %v696 = vunpack.c.l.b16 %v386
    %v697 = vunpack.c.h.b16 %v386
    %v698 = vunpack.c.l.b16 %v387
    %v699 = vunpack.c.h.b16 %v387
    %v700 = vunpack.c.l.b16 %v388
    %v701 = vunpack.c.h.b16 %v388
    %v702 = vunpack.c.l.b16 %v389
    %v703 = vunpack.c.h.b16 %v389
    %v704 = vunpack.c.l.b16 %v390
    %v705 = vunpack.c.h.b16 %v390
    %v706 = vunpack.c.l.b16 %v391
    %v707 = vunpack.c.h.b16 %v391
    %v708 = vunpack.c.l.b16 %v392
    %v709 = vunpack.c.h.b16 %v392
    %v710 = vunpack.c.l.b16 %v393
    %v711 = vunpack.c.h.b16 %v393
    %v712 = vunpack.c.l.b16 %v394
    %v713 = vunpack.c.h.b16 %v394
    %v714 = vunpack.c.l.b16 %v395
    %v715 = vunpack.c.h.b16 %v395
    %v716 = vunpack.c.l.b16 %v396
    %v717 = vunpack.c.h.b16 %v396
    %v718 = vunpack.c.l.b16 %v397
    %v719 = vunpack.c.h.b16 %v397
    %v720 = vunpack.c.l.b16 %v398
    %v721 = vunpack.c.h.b16 %v398
    %v722 = vunpack.c.l.b16 %v399
    %v723 = vunpack.c.h.b16 %v399
    %v724 = vunpack.c.l.b16 %v400
    %v725 = vunpack.c.h.b16 %v400
    %v726 = vunpack.c.l.b16 %v401
    %v727 = vunpack.c.h.b16 %v401
    %v728 = vunpack.c.l.b16 %v402
    %v729 = vunpack.c.h.b16 %v402
    %v730 = vunpack.c.l.b16 %v403
    %v731 = vunpack.c.h.b16 %v403
    %v732 = vunpack.c.l.b16 %v404
    %v733 = vunpack.c.h.b16 %v404
    %v734 = vunpack.c.l.b16 %v405
    %v735 = vunpack.c.h.b16 %v405
    %v736 = vunpack.c.l.b16 %v406
    %v737 = vunpack.c.h.b16 %v406
    %v738 = vunpack.c.l.b16 %v407
    %v739 = vunpack.c.h.b16 %v407
    %v740 = vunpack.c.l.b16 %v408
    %v741 = vunpack.c.h.b16 %v408
    %v742 = vunpack.c.l.b16 %v409
    %v743 = vunpack.c.h.b16 %v409
    %v744 = vunpack.c.l.b16 %v410
    %v745 = vunpack.c.h.b16 %v410
    %v746 = vunpack.c.l.b16 %v411
    %v747 = vunpack.c.h.b16 %v411
    %v748 = vunpack.c.l.b16 %v412
    %v749 = vunpack.c.h.b16 %v412
    %v750 = vunpack.c.l.b16 %v413
    %v751 = vunpack.c.h.b16 %v413
    %v752 = vunpack.c.l.b16 %v414
    %v753 = vunpack.c.h.b16 %v414
    %v754 = vunpack.c.l.b16 %v415
    %v755 = vunpack.c.h.b16 %v415
    %v756 = vunpack.c.l.b16 %v416
    %v757 = vunpack.c.h.b16 %v416
    %v758 = vunpack.c.l.b16 %v417
    %v759 = vunpack.c.h.b16 %v417
    %v760 = vunpack.c.l.b16 %v418
    %v761 = vunpack.c.h.b16 %v418
    %v762 = vunpack.c.l.b16 %v419
    %v763 = vunpack.c.h.b16 %v419
    %v764 = vunpack.c.l.b16 %v420
    %v765 = vunpack.c.h.b16 %v420
    %v766 = vunpack.c.l.b16 %v421
    %v767 = vunpack.c.h.b16 %v421
    %v768 = vunpack.c.l.b16 %v422
    %v769 = vunpack.c.h.b16 %v422
    %v770 = vunpack.c.l.b16 %v423
    %v771 = vunpack.c.h.b16 %v423
    %v772 = vunpack.c.l.b16 %v424
    %v773 = vunpack.c.h.b16 %v424
    %v774 = vunpack.c.l.b16 %v425
    %v775 = vunpack.c.h.b16 %v425
    %v776 = vunpack.c.l.b16 %v426
    %v777 = vunpack.c.h.b16 %v426
    %v778 = vunpack.c.l.b16 %v427
    %v779 = vunpack.c.h.b16 %v427
    %v780 = vunpack.c.l.b16 %v428
    %v781 = vunpack.c.h.b16 %v428
    %v782 = vunpack.c.l.b16 %v429
    %v783 = vunpack.c.h.b16 %v429
    %v784 = vunpack.c.l.b16 %v430
    %v785 = vunpack.c.h.b16 %v430
    %v786 = vunpack.c.l.b16 %v431
    %v787 = vunpack.c.h.b16 %v431
    %v788 = vunpack.c.l.b16 %v432
    %v789 = vunpack.c.h.b16 %v432
    %v790 = vunpack.c.l.b16 %v433
    %v791 = vunpack.c.h.b16 %v433
    %v792 = vunpack.c.l.b16 %v434
    %v793 = vunpack.c.h.b16 %v434
    %v794 = vunpack.c.l.b16 %v435
    %v795 = vunpack.c.h.b16 %v435
    %v796 = vunpack.c.l.b16 %v436
    %v797 = vunpack.c.h.b16 %v436
    %v798 = vunpack.c.l.b16 %v437
    %v799 = vunpack.c.h.b16 %v437
    %v800 = vunpack.c.l.b16 %v438
    %v801 = vunpack.c.h.b16 %v438
    %v802 = vunpack.c.l.b16 %v439
    %v803 = vunpack.c.h.b16 %v439
    %v804 = vunpack.c.l.b16 %v440
    %v805 = vunpack.c.h.b16 %v440
    %v806 = vunpack.c.l.b16 %v441
    %v807 = vunpack.c.h.b16 %v441
    %v808 = vunpack.c.l.b16 %v442
    %v809 = vunpack.c.h.b16 %v442
    %v810 = vunpack.c.l.b16 %v443
    %v811 = vunpack.c.h.b16 %v443
    %v812 = vunpack.c.l.b16 %v444
    %v813 = vunpack.c.h.b16 %v444
    %v814 = vunpack.c.l.b16 %v445
    %v815 = vunpack.c.h.b16 %v445
    %v816 = vunpack.c.l.b16 %v446
    %v817 = vunpack.c.h.b16 %v446
    %v818 = vunpack.c.l.b16 %v447
    %v819 = vunpack.c.h.b16 %v447
    %v820 = vunpack.c.l.b16 %v448
    %v821 = vunpack.c.h.b16 %v448
    %v822 = vunpack.c.l.b16 %v449
    %v823 = vunpack.c.h.b16 %v449
    %v824 = vunpack.c.l.b16 %v450
    %v825 = vunpack.c.h.b16 %v450
    %v826 = vunpack.c.l.b16 %v451
    %v827 = vunpack.c.h.b16 %v451
    %v828 = vunpack.c.l.b16 %v452
    %v829 = vunpack.c.h.b16 %v452
    %v830 = vunpack.c.l.b16 %v453
    %v831 = vunpack.c.h.b16 %v453
    %v832 = vunpack.c.l.b16 %v454
    %v833 = vunpack.c.h.b16 %v454
    %v834 = vunpack.c.l.b16 %v455
    %v835 = vunpack.c.h.b16 %v455
    %v836 = vunpack.c.l.b16 %v456
    %v837 = vunpack.c.h.b16 %v456
    %v838 = vunpack.c.l.b16 %v457
    %v839 = vunpack.c.h.b16 %v457
    %v840 = vunpack.c.l.b16 %v458
    %v841 = vunpack.c.h.b16 %v458
    %v842 = vunpack.c.l.b16 %v459
    %v843 = vunpack.c.h.b16 %v459
    %v844 = vpack.c.b16 %v604, %v588
    %v845 = vpack.c.b16 %v605, %v589
    %v846 = vpack.c.b16 %v606, %v590
    %v847 = vpack.c.b16 %v607, %v591
    %v848 = vpack.c.b16 %v608, %v592
    %v849 = vpack.c.b16 %v609, %v593
    %v850 = vpack.c.b16 %v610, %v594
    %v851 = vpack.c.b16 %v611, %v595
    %v852 = vpack.c.b16 %v612, %v596
    %v853 = vpack.c.b16 %v613, %v597
    %v854 = vpack.c.b16 %v614, %v598
    %v855 = vpack.c.b16 %v615, %v599
    %v856 = vpack.c.b16 %v616, %v600
    %v857 = vpack.c.b16 %v617, %v601
    %v858 = vpack.c.b16 %v618, %v602
    %v859 = vpack.c.b16 %v619, %v603
    %v860 = vpack.c.b16 %v636, %v620
    %v861 = vpack.c.b16 %v637, %v621
    %v862 = vpack.c.b16 %v638, %v622
    %v863 = vpack.c.b16 %v639, %v623
    %v864 = vpack.c.b16 %v640, %v624
    %v865 = vpack.c.b16 %v641, %v625
    %v866 = vpack.c.b16 %v642, %v626
    %v867 = vpack.c.b16 %v643, %v627
    %v868 = vpack.c.b16 %v644, %v628
    %v869 = vpack.c.b16 %v645, %v629
    %v870 = vpack.c.b16 %v646, %v630
    %v871 = vpack.c.b16 %v647, %v631
    %v872 = vpack.c.b16 %v648, %v632
    %v873 = vpack.c.b16 %v649, %v633
    %v874 = vpack.c.b16 %v650, %v634
    %v875 = vpack.c.b16 %v651, %v635
    %v876 = vpack.c.b16 %v668, %v652
    %v877 = vpack.c.b16 %v669, %v653
    %v878 = vpack.c.b16 %v670, %v654
    %v879 = vpack.c.b16 %v671, %v655
    %v880 = vpack.c.b16 %v672, %v656
    %v881 = vpack.c.b16 %v673, %v657
    %v882 = vpack.c.b16 %v674, %v658
    %v883 = vpack.c.b16 %v675, %v659
    %v884 = vpack.c.b16 %v676, %v660
    %v885 = vpack.c.b16 %v677, %v661
    %v886 = vpack.c.b16 %v678, %v662
    %v887 = vpack.c.b16 %v679, %v663
    %v888 = vpack.c.b16 %v680, %v664
    %v889 = vpack.c.b16 %v681, %v665
    %v890 = vpack.c.b16 %v682, %v666
    %v891 = vpack.c.b16 %v683, %v667
    %v892 = vpack.c.b16 %v700, %v684
    %v893 = vpack.c.b16 %v701, %v685
    %v894 = vpack.c.b16 %v702, %v686
    %v895 = vpack.c.b16 %v703, %v687
    %v896 = vpack.c.b16 %v704, %v688
    %v897 = vpack.c.b16 %v705, %v689
    %v898 = vpack.c.b16 %v706, %v690
    %v899 = vpack.c.b16 %v707, %v691
    %v900 = vpack.c.b16 %v708, %v692
    %v901 = vpack.c.b16 %v709, %v693
    %v902 = vpack.c.b16 %v710, %v694
    %v903 = vpack.c.b16 %v711, %v695
    %v904 = vpack.c.b16 %v712, %v696
    %v905 = vpack.c.b16 %v713, %v697
    %v906 = vpack.c.b16 %v714, %v698
    %v907 = vpack.c.b16 %v715, %v699
    %v908 = vpack.c.b16 %v732, %v716
    %v909 = vpack.c.b16 %v733, %v717
    %v910 = vpack.c.b16 %v734, %v718
    %v911 = vpack.c.b16 %v735, %v719
    %v912 = vpack.c.b16 %v736, %v720
    %v913 = vpack.c.b16 %v737, %v721
    %v914 = vpack.c.b16 %v738, %v722
    %v915 = vpack.c.b16 %v739, %v723
    %v916 = vpack.c.b16 %v740, %v724
    %v917 = vpack.c.b16 %v741, %v725
    %v918 = vpack.c.b16 %v742, %v726
    %v919 = vpack.c.b16 %v743, %v727
    %v920 = vpack.c.b16 %v744, %v728
    %v921 = vpack.c.b16 %v745, %v729
    %v922 = vpack.c.b16 %v746, %v730
    %v923 = vpack.c.b16 %v747, %v731
    %v924 = vpack.c.b16 %v764, %v748
    %v925 = vpack.c.b16 %v765, %v749
    %v926 = vpack.c.b16 %v766, %v750
    %v927 = vpack.c.b16 %v767, %v751
    %v928 = vpack.c.b16 %v768, %v752
    %v929 = vpack.c.b16 %v769, %v753
    %v930 = vpack.c.b16 %v770, %v754
    %v931 = vpack.c.b16 %v771, %v755
    %v932 = vpack.c.b16 %v772, %v756
    %v933 = vpack.c.b16 %v773, %v757
    %v934 = vpack.c.b16 %v774, %v758
    %v935 = vpack.c.b16 %v775, %v759
    %v936 = vpack.c.b16 %v776, %v760
    %v937 = vpack.c.b16 %v777, %v761
    %v938 = vpack.c.b16 %v778, %v762
    %v939 = vpack.c.b16 %v779, %v763
    %v940 = vpack.c.b16 %v796, %v780
    %v941 = vpack.c.b16 %v797, %v781
    %v942 = vpack.c.b16 %v798, %v782
    %v943 = vpack.c.b16 %v799, %v783
    %v944 = vpack.c.b16 %v800, %v784
    %v945 = vpack.c.b16 %v801, %v785
    %v946 = vpack.c.b16 %v802, %v786
    %v947 = vpack.c.b16 %v803, %v787
    %v948 = vpack.c.b16 %v804, %v788
    %v949 = vpack.c.b16 %v805, %v789
    %v950 = vpack.c.b16 %v806, %v790
    %v951 = vpack.c.b16 %v807, %v791
    %v952 = vpack.c.b16 %v808, %v792
    %v953 = vpack.c.b16 %v809, %v793
    %v954 = vpack.c.b16 %v810, %v794
    %v955 = vpack.c.b16 %v811, %v795
    %v956 = vpack.c.b16 %v828, %v812
    %v957 = vpack.c.b16 %v829, %v813
    %v958 = vpack.c.b16 %v830, %v814
    %v959 = vpack.c.b16 %v831, %v815
    %v960 = vpack.c.b16 %v832, %v816
    %v961 = vpack.c.b16 %v833, %v817
    %v962 = vpack.c.b16 %v834, %v818
    %v963 = vpack.c.b16 %v835, %v819
    %v964 = vpack.c.b16 %v836, %v820
    %v965 = vpack.c.b16 %v837, %v821
    %v966 = vpack.c.b16 %v838, %v822
    %v967 = vpack.c.b16 %v839, %v823
    %v968 = vpack.c.b16 %v840, %v824
    %v969 = vpack.c.b16 %v841, %v825
    %v970 = vpack.c.b16 %v842, %v826
    %v971 = vpack.c.b16 %v843, %v827
    %1100 = vmatprep.subr.bf16.mxu0 %v957
    %1101 = vmatpush1.bf16.msra.mxu0 %v956
    %1102 = vmatprep.subr.bf16.mxu0 %v941
    %1103 = vmatpush1.bf16.msra.mxu0 %v940
    %1104 = vmatprep.subr.bf16.mxu0 %v925
    %1105 = vmatpush1.bf16.msra.mxu0 %v924
    %1106 = vmatprep.subr.bf16.mxu0 %v909
    %1107 = vmatpush1.bf16.msra.mxu0 %v908
    %1108 = vmatprep.subr.bf16.mxu0 %v893
    %1109 = vmatpush1.bf16.msra.mxu0 %v892
    %1110 = vmatprep.subr.bf16.mxu0 %v877
    %1111 = vmatpush1.bf16.msra.mxu0 %v876
    %1112 = vmatprep.subr.bf16.mxu0 %v861
    %1113 = vmatpush1.bf16.msra.mxu0 %v860
    %1114 = vmatprep.subr.bf16.mxu0 %v845
    %1115 = vmatpush1.bf16.msra.mxu0 %v844
    %1116 = vmatprep.subr.bf16.mxu0 0
    %1117 = vmatpush2.bf16.msra.mxu0 0
    %1118 = vmatprep.subr.bf16.mxu0 0
    %1119 = vmatpush2.bf16.msra.mxu0 0
    %1120 = vmatprep.subr.bf16.mxu0 0
    %1121 = vmatpush2.bf16.msra.mxu0 0
    %1122 = vmatprep.subr.bf16.mxu0 0
    %1123 = vmatpush2.bf16.msra.mxu0 0
    %1124 = vmatprep.subr.bf16.mxu0 0
    %1125 = vmatpush2.bf16.msra.mxu0 0
    %1126 = vmatprep.subr.bf16.mxu0 0
    %1127 = vmatpush2.bf16.msra.mxu0 0
    %1128 = vmatprep.subr.bf16.mxu0 0
    %1129 = vmatpush2.bf16.msra.mxu0 0
    %1130 = vmatprep.subr.bf16.mxu0 0
    %1131 = vmatpush2.bf16.msra.mxu0 0
    %1132 = vmatprep.mubr.bf16.mxu0 0
    %1133 = vmatmul.mubr.bf16.gmra.mxu0 %v330
    %v1134 = vpop.f32.mrf.mxu0
    %v1135 = vadd.f32 0.0, %v1134
    %v1136 = vpop.f32.mrf.mxu0
    %v1137 = vadd.f32 0.0, %v1136
    %v1138 = vpop.f32.mrf.mxu0
    %v1139 = vadd.f32 0.0, %v1138
    %v1140 = vpop.f32.mrf.mxu0
    %v1141 = vadd.f32 0.0, %v1140
    %1142 = vmatprep.mubr.bf16.mxu0 0
    %1143 = vmatmul.mubr.bf16.gmra.mxu0 %v331
    %v1144 = vpop.f32.mrf.mxu0
    %v1145 = vadd.f32 0.0, %v1144
    %v1146 = vpop.f32.mrf.mxu0
    %v1147 = vadd.f32 0.0, %v1146
    %v1148 = vpop.f32.mrf.mxu0
    %v1149 = vadd.f32 0.0, %v1148
    %v1150 = vpop.f32.mrf.mxu0
    %v1151 = vadd.f32 0.0, %v1150
    %1152 = vdwg.mxu0
    %1153 = vmatprep.subr.bf16.mxu0 %v959
    %1154 = vmatpush1.bf16.msra.mxu0 %v958
    %1155 = vmatprep.subr.bf16.mxu0 %v943
    %1156 = vmatpush1.bf16.msra.mxu0 %v942
    %1157 = vmatprep.subr.bf16.mxu0 %v927
    %1158 = vmatpush1.bf16.msra.mxu0 %v926
    %1159 = vmatprep.subr.bf16.mxu0 %v911
    %1160 = vmatpush1.bf16.msra.mxu0 %v910
    %1161 = vmatprep.subr.bf16.mxu0 %v895
    %1162 = vmatpush1.bf16.msra.mxu0 %v894
    %1163 = vmatprep.subr.bf16.mxu0 %v879
    %1164 = vmatpush1.bf16.msra.mxu0 %v878
    %1165 = vmatprep.subr.bf16.mxu0 %v863
    %1166 = vmatpush1.bf16.msra.mxu0 %v862
    %1167 = vmatprep.subr.bf16.mxu0 %v847
    %1168 = vmatpush1.bf16.msra.mxu0 %v846
    %1169 = vmatprep.subr.bf16.mxu0 0
    %1170 = vmatpush2.bf16.msra.mxu0 0
    %1171 = vmatprep.subr.bf16.mxu0 0
    %1172 = vmatpush2.bf16.msra.mxu0 0
    %1173 = vmatprep.subr.bf16.mxu0 0
    %1174 = vmatpush2.bf16.msra.mxu0 0
    %1175 = vmatprep.subr.bf16.mxu0 0
    %1176 = vmatpush2.bf16.msra.mxu0 0
    %1177 = vmatprep.subr.bf16.mxu0 0
    %1178 = vmatpush2.bf16.msra.mxu0 0
    %1179 = vmatprep.subr.bf16.mxu0 0
    %1180 = vmatpush2.bf16.msra.mxu0 0
    %1181 = vmatprep.subr.bf16.mxu0 0
    %1182 = vmatpush2.bf16.msra.mxu0 0
    %1183 = vmatprep.subr.bf16.mxu0 0
    %1184 = vmatpush2.bf16.msra.mxu0 0
    %1185 = vmatprep.mubr.bf16.mxu0 0
    %1186 = vmatmul.mubr.bf16.gmra.mxu0 %v330
    %v1187 = vpop.f32.mrf.mxu0
    %v1188 = vadd.f32 0.0, %v1187
    %v1189 = vpop.f32.mrf.mxu0
    %v1190 = vadd.f32 0.0, %v1189
    %v1191 = vpop.f32.mrf.mxu0
    %v1192 = vadd.f32 0.0, %v1191
    %v1193 = vpop.f32.mrf.mxu0
    %v1194 = vadd.f32 0.0, %v1193
    %1195 = vmatprep.mubr.bf16.mxu0 0
    %1196 = vmatmul.mubr.bf16.gmra.mxu0 %v331
    %v1197 = vpop.f32.mrf.mxu0
    %v1198 = vadd.f32 0.0, %v1197
    %v1199 = vpop.f32.mrf.mxu0
    %v1200 = vadd.f32 0.0, %v1199
    %v1201 = vpop.f32.mrf.mxu0
    %v1202 = vadd.f32 0.0, %v1201
    %v1203 = vpop.f32.mrf.mxu0
    %v1204 = vadd.f32 0.0, %v1203
    %1205 = vdwg.mxu0
    %1206 = vmatprep.subr.bf16.mxu0 %v961
    %1207 = vmatpush1.bf16.msra.mxu0 %v960
    %1208 = vmatprep.subr.bf16.mxu0 %v945
    %1209 = vmatpush1.bf16.msra.mxu0 %v944
    %1210 = vmatprep.subr.bf16.mxu0 %v929
    %1211 = vmatpush1.bf16.msra.mxu0 %v928
    %1212 = vmatprep.subr.bf16.mxu0 %v913
    %1213 = vmatpush1.bf16.msra.mxu0 %v912
    %1214 = vmatprep.subr.bf16.mxu0 %v897
    %1215 = vmatpush1.bf16.msra.mxu0 %v896
    %1216 = vmatprep.subr.bf16.mxu0 %v881
    %1217 = vmatpush1.bf16.msra.mxu0 %v880
    %1218 = vmatprep.subr.bf16.mxu0 %v865
    %1219 = vmatpush1.bf16.msra.mxu0 %v864
    %1220 = vmatprep.subr.bf16.mxu0 %v849
    %1221 = vmatpush1.bf16.msra.mxu0 %v848
    %1222 = vmatprep.subr.bf16.mxu0 0
    %1223 = vmatpush2.bf16.msra.mxu0 0
    %1224 = vmatprep.subr.bf16.mxu0 0
    %1225 = vmatpush2.bf16.msra.mxu0 0
    %1226 = vmatprep.subr.bf16.mxu0 0
    %1227 = vmatpush2.bf16.msra.mxu0 0
    %1228 = vmatprep.subr.bf16.mxu0 0
    %1229 = vmatpush2.bf16.msra.mxu0 0
    %1230 = vmatprep.subr.bf16.mxu0 0
    %1231 = vmatpush2.bf16.msra.mxu0 0
    %1232 = vmatprep.subr.bf16.mxu0 0
    %1233 = vmatpush2.bf16.msra.mxu0 0
    %1234 = vmatprep.subr.bf16.mxu0 0
    %1235 = vmatpush2.bf16.msra.mxu0 0
    %1236 = vmatprep.subr.bf16.mxu0 0
    %1237 = vmatpush2.bf16.msra.mxu0 0
    %1238 = vmatprep.mubr.bf16.mxu0 0
    %1239 = vmatmul.mubr.bf16.gmra.mxu0 %v330
    %v1240 = vpop.f32.mrf.mxu0
    %v1241 = vadd.f32 0.0, %v1240
    %v1242 = vpop.f32.mrf.mxu0
    %v1243 = vadd.f32 0.0, %v1242
    %v1244 = vpop.f32.mrf.mxu0
    %v1245 = vadd.f32 0.0, %v1244
    %v1246 = vpop.f32.mrf.mxu0
    %v1247 = vadd.f32 0.0, %v1246
    %1248 = vmatprep.mubr.bf16.mxu0 0
    %1249 = vmatmul.mubr.bf16.gmra.mxu0 %v331
    %v1250 = vpop.f32.mrf.mxu0
    %v1251 = vadd.f32 0.0, %v1250
    %v1252 = vpop.f32.mrf.mxu0
    %v1253 = vadd.f32 0.0, %v1252
    %v1254 = vpop.f32.mrf.mxu0
    %v1255 = vadd.f32 0.0, %v1254
    %v1256 = vpop.f32.mrf.mxu0
    %v1257 = vadd.f32 0.0, %v1256
    %1258 = vdwg.mxu0
    %1259 = vmatprep.subr.bf16.mxu0 %v963
    %1260 = vmatpush1.bf16.msra.mxu0 %v962
    %1261 = vmatprep.subr.bf16.mxu0 %v947
    %1262 = vmatpush1.bf16.msra.mxu0 %v946
    %1263 = vmatprep.subr.bf16.mxu0 %v931
    %1264 = vmatpush1.bf16.msra.mxu0 %v930
    %1265 = vmatprep.subr.bf16.mxu0 %v915
    %1266 = vmatpush1.bf16.msra.mxu0 %v914
    %1267 = vmatprep.subr.bf16.mxu0 %v899
    %1268 = vmatpush1.bf16.msra.mxu0 %v898
    %1269 = vmatprep.subr.bf16.mxu0 %v883
    %1270 = vmatpush1.bf16.msra.mxu0 %v882
    %1271 = vmatprep.subr.bf16.mxu0 %v867
    %1272 = vmatpush1.bf16.msra.mxu0 %v866
    %1273 = vmatprep.subr.bf16.mxu0 %v851
    %1274 = vmatpush1.bf16.msra.mxu0 %v850
    %1275 = vmatprep.subr.bf16.mxu0 0
    %1276 = vmatpush2.bf16.msra.mxu0 0
    %1277 = vmatprep.subr.bf16.mxu0 0
    %1278 = vmatpush2.bf16.msra.mxu0 0
    %1279 = vmatprep.subr.bf16.mxu0 0
    %1280 = vmatpush2.bf16.msra.mxu0 0
    %1281 = vmatprep.subr.bf16.mxu0 0
    %1282 = vmatpush2.bf16.msra.mxu0 0
    %1283 = vmatprep.subr.bf16.mxu0 0
    %1284 = vmatpush2.bf16.msra.mxu0 0
    %1285 = vmatprep.subr.bf16.mxu0 0
    %1286 = vmatpush2.bf16.msra.mxu0 0
    %1287 = vmatprep.subr.bf16.mxu0 0
    %1288 = vmatpush2.bf16.msra.mxu0 0
    %1289 = vmatprep.subr.bf16.mxu0 0
    %1290 = vmatpush2.bf16.msra.mxu0 0
    %1291 = vmatprep.mubr.bf16.mxu0 0
    %1292 = vmatmul.mubr.bf16.gmra.mxu0 %v330
    %v1293 = vpop.f32.mrf.mxu0
    %v1294 = vadd.f32 0.0, %v1293
    %v1295 = vpop.f32.mrf.mxu0
    %v1296 = vadd.f32 0.0, %v1295
    %v1297 = vpop.f32.mrf.mxu0
    %v1298 = vadd.f32 0.0, %v1297
    %v1299 = vpop.f32.mrf.mxu0
    %v1300 = vadd.f32 0.0, %v1299
    %1301 = vmatprep.mubr.bf16.mxu0 0
    %1302 = vmatmul.mubr.bf16.gmra.mxu0 %v331
    %v1303 = vpop.f32.mrf.mxu0
    %v1304 = vadd.f32 0.0, %v1303
    %v1305 = vpop.f32.mrf.mxu0
    %v1306 = vadd.f32 0.0, %v1305
    %v1307 = vpop.f32.mrf.mxu0
    %v1308 = vadd.f32 0.0, %v1307
    %v1309 = vpop.f32.mrf.mxu0
    %v1310 = vadd.f32 0.0, %v1309
    %1311 = vdwg.mxu0
    %1312 = vmatprep.subr.bf16.mxu0 %v965
    %1313 = vmatpush1.bf16.msra.mxu0 %v964
    %1314 = vmatprep.subr.bf16.mxu0 %v949
    %1315 = vmatpush1.bf16.msra.mxu0 %v948
    %1316 = vmatprep.subr.bf16.mxu0 %v933
    %1317 = vmatpush1.bf16.msra.mxu0 %v932
    %1318 = vmatprep.subr.bf16.mxu0 %v917
    %1319 = vmatpush1.bf16.msra.mxu0 %v916
    %1320 = vmatprep.subr.bf16.mxu0 %v901
    %1321 = vmatpush1.bf16.msra.mxu0 %v900
    %1322 = vmatprep.subr.bf16.mxu0 %v885
    %1323 = vmatpush1.bf16.msra.mxu0 %v884
    %1324 = vmatprep.subr.bf16.mxu0 %v869
    %1325 = vmatpush1.bf16.msra.mxu0 %v868
    %1326 = vmatprep.subr.bf16.mxu0 %v853
    %1327 = vmatpush1.bf16.msra.mxu0 %v852
    %1328 = vmatprep.subr.bf16.mxu0 0
    %1329 = vmatpush2.bf16.msra.mxu0 0
    %1330 = vmatprep.subr.bf16.mxu0 0
    %1331 = vmatpush2.bf16.msra.mxu0 0
    %1332 = vmatprep.subr.bf16.mxu0 0
    %1333 = vmatpush2.bf16.msra.mxu0 0
    %1334 = vmatprep.subr.bf16.mxu0 0
    %1335 = vmatpush2.bf16.msra.mxu0 0
    %1336 = vmatprep.subr.bf16.mxu0 0
    %1337 = vmatpush2.bf16.msra.mxu0 0
    %1338 = vmatprep.subr.bf16.mxu0 0
    %1339 = vmatpush2.bf16.msra.mxu0 0
    %1340 = vmatprep.subr.bf16.mxu0 0
    %1341 = vmatpush2.bf16.msra.mxu0 0
    %1342 = vmatprep.subr.bf16.mxu0 0
    %1343 = vmatpush2.bf16.msra.mxu0 0
    %1344 = vmatprep.mubr.bf16.mxu0 0
    %1345 = vmatmul.mubr.bf16.gmra.mxu0 %v330
    %v1346 = vpop.f32.mrf.mxu0
    %v1347 = vadd.f32 0.0, %v1346
    %v1348 = vpop.f32.mrf.mxu0
    %v1349 = vadd.f32 0.0, %v1348
    %v1350 = vpop.f32.mrf.mxu0
    %v1351 = vadd.f32 0.0, %v1350
    %v1352 = vpop.f32.mrf.mxu0
    %v1353 = vadd.f32 0.0, %v1352
    %1354 = vmatprep.mubr.bf16.mxu0 0
    %1355 = vmatmul.mubr.bf16.gmra.mxu0 %v331
    %v1356 = vpop.f32.mrf.mxu0
    %v1357 = vadd.f32 0.0, %v1356
    %v1358 = vpop.f32.mrf.mxu0
    %v1359 = vadd.f32 0.0, %v1358
    %v1360 = vpop.f32.mrf.mxu0
    %v1361 = vadd.f32 0.0, %v1360
    %v1362 = vpop.f32.mrf.mxu0
    %v1363 = vadd.f32 0.0, %v1362
    %1364 = vdwg.mxu0
    %1365 = vmatprep.subr.bf16.mxu0 %v967
    %1366 = vmatpush1.bf16.msra.mxu0 %v966
    %1367 = vmatprep.subr.bf16.mxu0 %v951
    %1368 = vmatpush1.bf16.msra.mxu0 %v950
    %1369 = vmatprep.subr.bf16.mxu0 %v935
    %1370 = vmatpush1.bf16.msra.mxu0 %v934
    %1371 = vmatprep.subr.bf16.mxu0 %v919
    %1372 = vmatpush1.bf16.msra.mxu0 %v918
    %1373 = vmatprep.subr.bf16.mxu0 %v903
    %1374 = vmatpush1.bf16.msra.mxu0 %v902
    %1375 = vmatprep.subr.bf16.mxu0 %v887
    %1376 = vmatpush1.bf16.msra.mxu0 %v886
    %1377 = vmatprep.subr.bf16.mxu0 %v871
    %1378 = vmatpush1.bf16.msra.mxu0 %v870
    %1379 = vmatprep.subr.bf16.mxu0 %v855
    %1380 = vmatpush1.bf16.msra.mxu0 %v854
    %1381 = vmatprep.subr.bf16.mxu0 0
    %1382 = vmatpush2.bf16.msra.mxu0 0
    %1383 = vmatprep.subr.bf16.mxu0 0
    %1384 = vmatpush2.bf16.msra.mxu0 0
    %1385 = vmatprep.subr.bf16.mxu0 0
    %1386 = vmatpush2.bf16.msra.mxu0 0
    %1387 = vmatprep.subr.bf16.mxu0 0
    %1388 = vmatpush2.bf16.msra.mxu0 0
    %1389 = vmatprep.subr.bf16.mxu0 0
    %1390 = vmatpush2.bf16.msra.mxu0 0
    %1391 = vmatprep.subr.bf16.mxu0 0
    %1392 = vmatpush2.bf16.msra.mxu0 0
    %1393 = vmatprep.subr.bf16.mxu0 0
    %1394 = vmatpush2.bf16.msra.mxu0 0
    %1395 = vmatprep.subr.bf16.mxu0 0
    %1396 = vmatpush2.bf16.msra.mxu0 0
    %1397 = vmatprep.mubr.bf16.mxu0 0
    %1398 = vmatmul.mubr.bf16.gmra.mxu0 %v330
    %v1399 = vpop.f32.mrf.mxu0
    %v1400 = vadd.f32 0.0, %v1399
    %v1401 = vpop.f32.mrf.mxu0
    %v1402 = vadd.f32 0.0, %v1401
    %v1403 = vpop.f32.mrf.mxu0
    %v1404 = vadd.f32 0.0, %v1403
    %v1405 = vpop.f32.mrf.mxu0
    %v1406 = vadd.f32 0.0, %v1405
    %1407 = vmatprep.mubr.bf16.mxu0 0
    %1408 = vmatmul.mubr.bf16.gmra.mxu0 %v331
    %v1409 = vpop.f32.mrf.mxu0
    %v1410 = vadd.f32 0.0, %v1409
    %v1411 = vpop.f32.mrf.mxu0
    %v1412 = vadd.f32 0.0, %v1411
    %v1413 = vpop.f32.mrf.mxu0
    %v1414 = vadd.f32 0.0, %v1413
    %v1415 = vpop.f32.mrf.mxu0
    %v1416 = vadd.f32 0.0, %v1415
    %1417 = vdwg.mxu0
    %1418 = vmatprep.subr.bf16.mxu0 %v969
    %1419 = vmatpush1.bf16.msra.mxu0 %v968
    %1420 = vmatprep.subr.bf16.mxu0 %v953
    %1421 = vmatpush1.bf16.msra.mxu0 %v952
    %1422 = vmatprep.subr.bf16.mxu0 %v937
    %1423 = vmatpush1.bf16.msra.mxu0 %v936
    %1424 = vmatprep.subr.bf16.mxu0 %v921
    %1425 = vmatpush1.bf16.msra.mxu0 %v920
    %1426 = vmatprep.subr.bf16.mxu0 %v905
    %1427 = vmatpush1.bf16.msra.mxu0 %v904
    %1428 = vmatprep.subr.bf16.mxu0 %v889
    %1429 = vmatpush1.bf16.msra.mxu0 %v888
    %1430 = vmatprep.subr.bf16.mxu0 %v873
    %1431 = vmatpush1.bf16.msra.mxu0 %v872
    %1432 = vmatprep.subr.bf16.mxu0 %v857
    %1433 = vmatpush1.bf16.msra.mxu0 %v856
    %1434 = vmatprep.subr.bf16.mxu0 0
    %1435 = vmatpush2.bf16.msra.mxu0 0
    %1436 = vmatprep.subr.bf16.mxu0 0
    %1437 = vmatpush2.bf16.msra.mxu0 0
    %1438 = vmatprep.subr.bf16.mxu0 0
    %1439 = vmatpush2.bf16.msra.mxu0 0
    %1440 = vmatprep.subr.bf16.mxu0 0
    %1441 = vmatpush2.bf16.msra.mxu0 0
    %1442 = vmatprep.subr.bf16.mxu0 0
    %1443 = vmatpush2.bf16.msra.mxu0 0
    %1444 = vmatprep.subr.bf16.mxu0 0
    %1445 = vmatpush2.bf16.msra.mxu0 0
    %1446 = vmatprep.subr.bf16.mxu0 0
    %1447 = vmatpush2.bf16.msra.mxu0 0
    %1448 = vmatprep.subr.bf16.mxu0 0
    %1449 = vmatpush2.bf16.msra.mxu0 0
    %1450 = vmatprep.mubr.bf16.mxu0 0
    %1451 = vmatmul.mubr.bf16.gmra.mxu0 %v330
    %v1452 = vpop.f32.mrf.mxu0
    %v1453 = vadd.f32 0.0, %v1452
    %v1454 = vpop.f32.mrf.mxu0
    %v1455 = vadd.f32 0.0, %v1454
    %v1456 = vpop.f32.mrf.mxu0
    %v1457 = vadd.f32 0.0, %v1456
    %v1458 = vpop.f32.mrf.mxu0
    %v1459 = vadd.f32 0.0, %v1458
    %1460 = vmatprep.mubr.bf16.mxu0 0
    %1461 = vmatmul.mubr.bf16.gmra.mxu0 %v331
    %v1462 = vpop.f32.mrf.mxu0
    %v1463 = vadd.f32 0.0, %v1462
    %v1464 = vpop.f32.mrf.mxu0
    %v1465 = vadd.f32 0.0, %v1464
    %v1466 = vpop.f32.mrf.mxu0
    %v1467 = vadd.f32 0.0, %v1466
    %v1468 = vpop.f32.mrf.mxu0
    %v1469 = vadd.f32 0.0, %v1468
    %1470 = vdwg.mxu0
    %1471 = vmatprep.subr.bf16.mxu0 %v971
    %1472 = vmatpush1.bf16.msra.mxu0 %v970
    %1473 = vmatprep.subr.bf16.mxu0 %v955
    %1474 = vmatpush1.bf16.msra.mxu0 %v954
    %1475 = vmatprep.subr.bf16.mxu0 %v939
    %1476 = vmatpush1.bf16.msra.mxu0 %v938
    %1477 = vmatprep.subr.bf16.mxu0 %v923
    %1478 = vmatpush1.bf16.msra.mxu0 %v922
    %1479 = vmatprep.subr.bf16.mxu0 %v907
    %1480 = vmatpush1.bf16.msra.mxu0 %v906
    %1481 = vmatprep.subr.bf16.mxu0 %v891
    %1482 = vmatpush1.bf16.msra.mxu0 %v890
    %1483 = vmatprep.subr.bf16.mxu0 %v875
    %1484 = vmatpush1.bf16.msra.mxu0 %v874
    %1485 = vmatprep.subr.bf16.mxu0 %v859
    %1486 = vmatpush1.bf16.msra.mxu0 %v858
    %1487 = vmatprep.subr.bf16.mxu0 0
    %1488 = vmatpush2.bf16.msra.mxu0 0
    %1489 = vmatprep.subr.bf16.mxu0 0
    %1490 = vmatpush2.bf16.msra.mxu0 0
    %1491 = vmatprep.subr.bf16.mxu0 0
    %1492 = vmatpush2.bf16.msra.mxu0 0
    %1493 = vmatprep.subr.bf16.mxu0 0
    %1494 = vmatpush2.bf16.msra.mxu0 0
    %1495 = vmatprep.subr.bf16.mxu0 0
    %1496 = vmatpush2.bf16.msra.mxu0 0
    %1497 = vmatprep.subr.bf16.mxu0 0
    %1498 = vmatpush2.bf16.msra.mxu0 0
    %1499 = vmatprep.subr.bf16.mxu0 0
    %1500 = vmatpush2.bf16.msra.mxu0 0
    %1501 = vmatprep.subr.bf16.mxu0 0
    %1502 = vmatpush2.bf16.msra.mxu0 0
    %1503 = vmatprep.mubr.bf16.mxu0 0
    %1504 = vmatmul.mubr.bf16.gmra.mxu0 %v330
    %v1505 = vpop.f32.mrf.mxu0
    %v1506 = vadd.f32 0.0, %v1505
    %v1507 = vpop.f32.mrf.mxu0
    %v1508 = vadd.f32 0.0, %v1507
    %v1509 = vpop.f32.mrf.mxu0
    %v1510 = vadd.f32 0.0, %v1509
    %v1511 = vpop.f32.mrf.mxu0
    %v1512 = vadd.f32 0.0, %v1511
    %1513 = vmatprep.mubr.bf16.mxu0 0
    %1514 = vmatmul.mubr.bf16.gmra.mxu0 %v331
    %v1515 = vpop.f32.mrf.mxu0
    %v1516 = vadd.f32 0.0, %v1515
    %v1517 = vpop.f32.mrf.mxu0
    %v1518 = vadd.f32 0.0, %v1517
    %v1519 = vpop.f32.mrf.mxu0
    %v1520 = vadd.f32 0.0, %v1519
    %v1521 = vpop.f32.mrf.mxu0
    %v1522 = vadd.f32 0.0, %v1521
    %1523 = vdwg.mxu0
    %v1524 = vlaneseq
    %v1525 = vshrl.u32 %v1524, 7
    %v1526 = vadd.s32 %v1525, 8
    %v1527 = vadd.s32 %v1525, 16
    %v1528 = vadd.s32 %v1525, 24
    %v1529 = vand.u32 %v1525, 15
    %v1530 = vand.u32 %v1526, 15
    %v1531 = vand.u32 %v1527, 15
    %v1532 = vand.u32 %v1528, 15
    %vm1533 = vcmp.eq.s32.totalorder %v1529, 0
    %vm1534 = vcmp.eq.s32.totalorder %v1530, 0
    %vm1535 = vcmp.eq.s32.totalorder %v1531, 0
    %vm1536 = vcmp.eq.s32.totalorder %v1532, 0
    %v1537 = vsel %vm1533, 1, 0
    %v1538 = vsel %vm1534, 1, 0
    %v1539 = vsel %vm1535, 1, 0
    %v1540 = vsel %vm1536, 1, 0
    %vm1541 = vcmp.eq.s32.totalorder %v1537, 1
    %vm1542 = vcmp.eq.s32.totalorder %v1538, 1
    %vm1543 = vcmp.eq.s32.totalorder %v1539, 1
    %vm1544 = vcmp.eq.s32.totalorder %v1540, 1
    %v1545 = vsel %vm1541, %v1135, 0.0
    %v1546 = vsel %vm1542, %v1139, 0.0
    %v1547 = vsel %vm1543, %v1145, 0.0
    %v1548 = vsel %vm1544, %v1149, 0.0
    %vm1549 = vcmp.eq.s32.totalorder %v1529, 1
    %vm1550 = vcmp.eq.s32.totalorder %v1530, 1
    %vm1551 = vcmp.eq.s32.totalorder %v1531, 1
    %vm1552 = vcmp.eq.s32.totalorder %v1532, 1
    %v1553 = vsel %vm1549, 1, 0
    %v1554 = vsel %vm1550, 1, 0
    %v1555 = vsel %vm1551, 1, 0
    %v1556 = vsel %vm1552, 1, 0
    %vm1557 = vcmp.eq.s32.totalorder %v1553, 1
    %vm1558 = vcmp.eq.s32.totalorder %v1554, 1
    %vm1559 = vcmp.eq.s32.totalorder %v1555, 1
    %vm1560 = vcmp.eq.s32.totalorder %v1556, 1
    %v1561 = vsel %vm1557, %v1137, 0.0
    %v1562 = vsel %vm1558, %v1141, 0.0
    %v1563 = vsel %vm1559, %v1147, 0.0
    %v1564 = vsel %vm1560, %v1151, 0.0
    %vm1565 = vcmp.eq.s32.totalorder %v1529, 2
    %vm1566 = vcmp.eq.s32.totalorder %v1530, 2
    %vm1567 = vcmp.eq.s32.totalorder %v1531, 2
    %vm1568 = vcmp.eq.s32.totalorder %v1532, 2
    %v1569 = vsel %vm1565, 1, 0
    %v1570 = vsel %vm1566, 1, 0
    %v1571 = vsel %vm1567, 1, 0
    %v1572 = vsel %vm1568, 1, 0
    %vm1573 = vcmp.eq.s32.totalorder %v1569, 1
    %vm1574 = vcmp.eq.s32.totalorder %v1570, 1
    %vm1575 = vcmp.eq.s32.totalorder %v1571, 1
    %vm1576 = vcmp.eq.s32.totalorder %v1572, 1
    %v1577 = vsel %vm1573, %v1188, 0.0
    %v1578 = vsel %vm1574, %v1192, 0.0
    %v1579 = vsel %vm1575, %v1198, 0.0
    %v1580 = vsel %vm1576, %v1202, 0.0
    %vm1581 = vcmp.eq.s32.totalorder %v1529, 3
    %vm1582 = vcmp.eq.s32.totalorder %v1530, 3
    %vm1583 = vcmp.eq.s32.totalorder %v1531, 3
    %vm1584 = vcmp.eq.s32.totalorder %v1532, 3
    %v1585 = vsel %vm1581, 1, 0
    %v1586 = vsel %vm1582, 1, 0
    %v1587 = vsel %vm1583, 1, 0
    %v1588 = vsel %vm1584, 1, 0
    %vm1589 = vcmp.eq.s32.totalorder %v1585, 1
    %vm1590 = vcmp.eq.s32.totalorder %v1586, 1
    %vm1591 = vcmp.eq.s32.totalorder %v1587, 1
    %vm1592 = vcmp.eq.s32.totalorder %v1588, 1
    %v1593 = vsel %vm1589, %v1190, 0.0
    %v1594 = vsel %vm1590, %v1194, 0.0
    %v1595 = vsel %vm1591, %v1200, 0.0
    %v1596 = vsel %vm1592, %v1204, 0.0
    %vm1597 = vcmp.eq.s32.totalorder %v1529, 4
    %vm1598 = vcmp.eq.s32.totalorder %v1530, 4
    %vm1599 = vcmp.eq.s32.totalorder %v1531, 4
    %vm1600 = vcmp.eq.s32.totalorder %v1532, 4
    %v1601 = vsel %vm1597, 1, 0
    %v1602 = vsel %vm1598, 1, 0
    %v1603 = vsel %vm1599, 1, 0
    %v1604 = vsel %vm1600, 1, 0
    %vm1605 = vcmp.eq.s32.totalorder %v1601, 1
    %vm1606 = vcmp.eq.s32.totalorder %v1602, 1
    %vm1607 = vcmp.eq.s32.totalorder %v1603, 1
    %vm1608 = vcmp.eq.s32.totalorder %v1604, 1
    %v1609 = vsel %vm1605, %v1241, 0.0
    %v1610 = vsel %vm1606, %v1245, 0.0
    %v1611 = vsel %vm1607, %v1251, 0.0
    %v1612 = vsel %vm1608, %v1255, 0.0
    %vm1613 = vcmp.eq.s32.totalorder %v1529, 5
    %vm1614 = vcmp.eq.s32.totalorder %v1530, 5
    %vm1615 = vcmp.eq.s32.totalorder %v1531, 5
    %vm1616 = vcmp.eq.s32.totalorder %v1532, 5
    %v1617 = vsel %vm1613, 1, 0
    %v1618 = vsel %vm1614, 1, 0
    %v1619 = vsel %vm1615, 1, 0
    %v1620 = vsel %vm1616, 1, 0
    %vm1621 = vcmp.eq.s32.totalorder %v1617, 1
    %vm1622 = vcmp.eq.s32.totalorder %v1618, 1
    %vm1623 = vcmp.eq.s32.totalorder %v1619, 1
    %vm1624 = vcmp.eq.s32.totalorder %v1620, 1
    %v1625 = vsel %vm1621, %v1243, 0.0
    %v1626 = vsel %vm1622, %v1247, 0.0
    %v1627 = vsel %vm1623, %v1253, 0.0
    %v1628 = vsel %vm1624, %v1257, 0.0
    %vm1629 = vcmp.eq.s32.totalorder %v1529, 6
    %vm1630 = vcmp.eq.s32.totalorder %v1530, 6
    %vm1631 = vcmp.eq.s32.totalorder %v1531, 6
    %vm1632 = vcmp.eq.s32.totalorder %v1532, 6
    %v1633 = vsel %vm1629, 1, 0
    %v1634 = vsel %vm1630, 1, 0
    %v1635 = vsel %vm1631, 1, 0
    %v1636 = vsel %vm1632, 1, 0
    %vm1637 = vcmp.eq.s32.totalorder %v1633, 1
    %vm1638 = vcmp.eq.s32.totalorder %v1634, 1
    %vm1639 = vcmp.eq.s32.totalorder %v1635, 1
    %vm1640 = vcmp.eq.s32.totalorder %v1636, 1
    %v1641 = vsel %vm1637, %v1294, 0.0
    %v1642 = vsel %vm1638, %v1298, 0.0
    %v1643 = vsel %vm1639, %v1304, 0.0
    %v1644 = vsel %vm1640, %v1308, 0.0
    %vm1645 = vcmp.eq.s32.totalorder %v1529, 7
    %vm1646 = vcmp.eq.s32.totalorder %v1530, 7
    %vm1647 = vcmp.eq.s32.totalorder %v1531, 7
    %vm1648 = vcmp.eq.s32.totalorder %v1532, 7
    %v1649 = vsel %vm1645, 1, 0
    %v1650 = vsel %vm1646, 1, 0
    %v1651 = vsel %vm1647, 1, 0
    %v1652 = vsel %vm1648, 1, 0
    %vm1653 = vcmp.eq.s32.totalorder %v1649, 1
    %vm1654 = vcmp.eq.s32.totalorder %v1650, 1
    %vm1655 = vcmp.eq.s32.totalorder %v1651, 1
    %vm1656 = vcmp.eq.s32.totalorder %v1652, 1
    %v1657 = vsel %vm1653, %v1296, 0.0
    %v1658 = vsel %vm1654, %v1300, 0.0
    %v1659 = vsel %vm1655, %v1306, 0.0
    %v1660 = vsel %vm1656, %v1310, 0.0
    %vm1661 = vcmp.eq.s32.totalorder %v1529, 8
    %vm1662 = vcmp.eq.s32.totalorder %v1530, 8
    %vm1663 = vcmp.eq.s32.totalorder %v1531, 8
    %vm1664 = vcmp.eq.s32.totalorder %v1532, 8
    %v1665 = vsel %vm1661, 1, 0
    %v1666 = vsel %vm1662, 1, 0
    %v1667 = vsel %vm1663, 1, 0
    %v1668 = vsel %vm1664, 1, 0
    %vm1669 = vcmp.eq.s32.totalorder %v1665, 1
    %vm1670 = vcmp.eq.s32.totalorder %v1666, 1
    %vm1671 = vcmp.eq.s32.totalorder %v1667, 1
    %vm1672 = vcmp.eq.s32.totalorder %v1668, 1
    %v1673 = vsel %vm1669, %v1347, 0.0
    %v1674 = vsel %vm1670, %v1351, 0.0
    %v1675 = vsel %vm1671, %v1357, 0.0
    %v1676 = vsel %vm1672, %v1361, 0.0
    %vm1677 = vcmp.eq.s32.totalorder %v1529, 9
    %vm1678 = vcmp.eq.s32.totalorder %v1530, 9
    %vm1679 = vcmp.eq.s32.totalorder %v1531, 9
    %vm1680 = vcmp.eq.s32.totalorder %v1532, 9
    %v1681 = vsel %vm1677, 1, 0
    %v1682 = vsel %vm1678, 1, 0
    %v1683 = vsel %vm1679, 1, 0
    %v1684 = vsel %vm1680, 1, 0
    %vm1685 = vcmp.eq.s32.totalorder %v1681, 1
    %vm1686 = vcmp.eq.s32.totalorder %v1682, 1
    %vm1687 = vcmp.eq.s32.totalorder %v1683, 1
    %vm1688 = vcmp.eq.s32.totalorder %v1684, 1
    %v1689 = vsel %vm1685, %v1349, 0.0
    %v1690 = vsel %vm1686, %v1353, 0.0
    %v1691 = vsel %vm1687, %v1359, 0.0
    %v1692 = vsel %vm1688, %v1363, 0.0
    %vm1693 = vcmp.eq.s32.totalorder %v1529, 10
    %vm1694 = vcmp.eq.s32.totalorder %v1530, 10
    %vm1695 = vcmp.eq.s32.totalorder %v1531, 10
    %vm1696 = vcmp.eq.s32.totalorder %v1532, 10
    %v1697 = vsel %vm1693, 1, 0
    %v1698 = vsel %vm1694, 1, 0
    %v1699 = vsel %vm1695, 1, 0
    %v1700 = vsel %vm1696, 1, 0
    %vm1701 = vcmp.eq.s32.totalorder %v1697, 1
    %vm1702 = vcmp.eq.s32.totalorder %v1698, 1
    %vm1703 = vcmp.eq.s32.totalorder %v1699, 1
    %vm1704 = vcmp.eq.s32.totalorder %v1700, 1
    %v1705 = vsel %vm1701, %v1400, 0.0
    %v1706 = vsel %vm1702, %v1404, 0.0
    %v1707 = vsel %vm1703, %v1410, 0.0
    %v1708 = vsel %vm1704, %v1414, 0.0
    %vm1709 = vcmp.eq.s32.totalorder %v1529, 11
    %vm1710 = vcmp.eq.s32.totalorder %v1530, 11
    %vm1711 = vcmp.eq.s32.totalorder %v1531, 11
    %vm1712 = vcmp.eq.s32.totalorder %v1532, 11
    %v1713 = vsel %vm1709, 1, 0
    %v1714 = vsel %vm1710, 1, 0
    %v1715 = vsel %vm1711, 1, 0
    %v1716 = vsel %vm1712, 1, 0
    %vm1717 = vcmp.eq.s32.totalorder %v1713, 1
    %vm1718 = vcmp.eq.s32.totalorder %v1714, 1
    %vm1719 = vcmp.eq.s32.totalorder %v1715, 1
    %vm1720 = vcmp.eq.s32.totalorder %v1716, 1
    %v1721 = vsel %vm1717, %v1402, 0.0
    %v1722 = vsel %vm1718, %v1406, 0.0
    %v1723 = vsel %vm1719, %v1412, 0.0
    %v1724 = vsel %vm1720, %v1416, 0.0
    %vm1725 = vcmp.eq.s32.totalorder %v1529, 12
    %vm1726 = vcmp.eq.s32.totalorder %v1530, 12
    %vm1727 = vcmp.eq.s32.totalorder %v1531, 12
    %vm1728 = vcmp.eq.s32.totalorder %v1532, 12
    %v1729 = vsel %vm1725, 1, 0
    %v1730 = vsel %vm1726, 1, 0
    %v1731 = vsel %vm1727, 1, 0
    %v1732 = vsel %vm1728, 1, 0
    %vm1733 = vcmp.eq.s32.totalorder %v1729, 1
    %vm1734 = vcmp.eq.s32.totalorder %v1730, 1
    %vm1735 = vcmp.eq.s32.totalorder %v1731, 1
    %vm1736 = vcmp.eq.s32.totalorder %v1732, 1
    %v1737 = vsel %vm1733, %v1453, 0.0
    %v1738 = vsel %vm1734, %v1457, 0.0
    %v1739 = vsel %vm1735, %v1463, 0.0
    %v1740 = vsel %vm1736, %v1467, 0.0
    %vm1741 = vcmp.eq.s32.totalorder %v1529, 13
    %vm1742 = vcmp.eq.s32.totalorder %v1530, 13
    %vm1743 = vcmp.eq.s32.totalorder %v1531, 13
    %vm1744 = vcmp.eq.s32.totalorder %v1532, 13
    %v1745 = vsel %vm1741, 1, 0
    %v1746 = vsel %vm1742, 1, 0
    %v1747 = vsel %vm1743, 1, 0
    %v1748 = vsel %vm1744, 1, 0
    %vm1749 = vcmp.eq.s32.totalorder %v1745, 1
    %vm1750 = vcmp.eq.s32.totalorder %v1746, 1
    %vm1751 = vcmp.eq.s32.totalorder %v1747, 1
    %vm1752 = vcmp.eq.s32.totalorder %v1748, 1
    %v1753 = vsel %vm1749, %v1455, 0.0
    %v1754 = vsel %vm1750, %v1459, 0.0
    %v1755 = vsel %vm1751, %v1465, 0.0
    %v1756 = vsel %vm1752, %v1469, 0.0
    %vm1757 = vcmp.eq.s32.totalorder %v1529, 14
    %vm1758 = vcmp.eq.s32.totalorder %v1530, 14
    %vm1759 = vcmp.eq.s32.totalorder %v1531, 14
    %vm1760 = vcmp.eq.s32.totalorder %v1532, 14
    %v1761 = vsel %vm1757, 1, 0
    %v1762 = vsel %vm1758, 1, 0
    %v1763 = vsel %vm1759, 1, 0
    %v1764 = vsel %vm1760, 1, 0
    %vm1765 = vcmp.eq.s32.totalorder %v1761, 1
    %vm1766 = vcmp.eq.s32.totalorder %v1762, 1
    %vm1767 = vcmp.eq.s32.totalorder %v1763, 1
    %vm1768 = vcmp.eq.s32.totalorder %v1764, 1
    %v1769 = vsel %vm1765, %v1506, 0.0
    %v1770 = vsel %vm1766, %v1510, 0.0
    %v1771 = vsel %vm1767, %v1516, 0.0
    %v1772 = vsel %vm1768, %v1520, 0.0
    %vm1773 = vcmp.eq.s32.totalorder %v1529, 15
    %vm1774 = vcmp.eq.s32.totalorder %v1530, 15
    %vm1775 = vcmp.eq.s32.totalorder %v1531, 15
    %vm1776 = vcmp.eq.s32.totalorder %v1532, 15
    %v1777 = vsel %vm1773, 1, 0
    %v1778 = vsel %vm1774, 1, 0
    %v1779 = vsel %vm1775, 1, 0
    %v1780 = vsel %vm1776, 1, 0
    %vm1781 = vcmp.eq.s32.totalorder %v1777, 1
    %vm1782 = vcmp.eq.s32.totalorder %v1778, 1
    %vm1783 = vcmp.eq.s32.totalorder %v1779, 1
    %vm1784 = vcmp.eq.s32.totalorder %v1780, 1
    %v1785 = vsel %vm1781, %v1508, 0.0
    %v1786 = vsel %vm1782, %v1512, 0.0
    %v1787 = vsel %vm1783, %v1518, 0.0
    %v1788 = vsel %vm1784, %v1522, 0.0
    %v1789 = vadd.f32 %v1545, %v1561
    %v1790 = vadd.f32 %v1546, %v1562
    %v1791 = vadd.f32 %v1547, %v1563
    %v1792 = vadd.f32 %v1548, %v1564
    %v1793 = vadd.f32 %v1577, %v1593
    %v1794 = vadd.f32 %v1578, %v1594
    %v1795 = vadd.f32 %v1579, %v1595
    %v1796 = vadd.f32 %v1580, %v1596
    %v1797 = vadd.f32 %v1609, %v1625
    %v1798 = vadd.f32 %v1610, %v1626
    %v1799 = vadd.f32 %v1611, %v1627
    %v1800 = vadd.f32 %v1612, %v1628
    %v1801 = vadd.f32 %v1641, %v1657
    %v1802 = vadd.f32 %v1642, %v1658
    %v1803 = vadd.f32 %v1643, %v1659
    %v1804 = vadd.f32 %v1644, %v1660
    %v1805 = vadd.f32 %v1673, %v1689
    %v1806 = vadd.f32 %v1674, %v1690
    %v1807 = vadd.f32 %v1675, %v1691
    %v1808 = vadd.f32 %v1676, %v1692
    %v1809 = vadd.f32 %v1705, %v1721
    %v1810 = vadd.f32 %v1706, %v1722
    %v1811 = vadd.f32 %v1707, %v1723
    %v1812 = vadd.f32 %v1708, %v1724
    %v1813 = vadd.f32 %v1737, %v1753
    %v1814 = vadd.f32 %v1738, %v1754
    %v1815 = vadd.f32 %v1739, %v1755
    %v1816 = vadd.f32 %v1740, %v1756
    %v1817 = vadd.f32 %v1769, %v1785
    %v1818 = vadd.f32 %v1770, %v1786
    %v1819 = vadd.f32 %v1771, %v1787
    %v1820 = vadd.f32 %v1772, %v1788
    %v1821 = vadd.f32 %v1789, %v1793
    %v1822 = vadd.f32 %v1790, %v1794
    %v1823 = vadd.f32 %v1791, %v1795
    %v1824 = vadd.f32 %v1792, %v1796
    %v1825 = vadd.f32 %v1797, %v1801
    %v1826 = vadd.f32 %v1798, %v1802
    %v1827 = vadd.f32 %v1799, %v1803
    %v1828 = vadd.f32 %v1800, %v1804
    %v1829 = vadd.f32 %v1805, %v1809
    %v1830 = vadd.f32 %v1806, %v1810
    %v1831 = vadd.f32 %v1807, %v1811
    %v1832 = vadd.f32 %v1808, %v1812
    %v1833 = vadd.f32 %v1813, %v1817
    %v1834 = vadd.f32 %v1814, %v1818
    %v1835 = vadd.f32 %v1815, %v1819
    %v1836 = vadd.f32 %v1816, %v1820
    %v1837 = vadd.f32 %v1821, %v1825
    %v1838 = vadd.f32 %v1822, %v1826
    %v1839 = vadd.f32 %v1823, %v1827
    %v1840 = vadd.f32 %v1824, %v1828
    %v1841 = vadd.f32 %v1829, %v1833
    %v1842 = vadd.f32 %v1830, %v1834
    %v1843 = vadd.f32 %v1831, %v1835
    %v1844 = vadd.f32 %v1832, %v1836
    %v1845 = vadd.f32 %v1837, %v1841
    %v1846 = vadd.f32 %v1838, %v1842
    %v1847 = vadd.f32 %v1839, %v1843
    %v1848 = vadd.f32 %v1840, %v1844
    %v1849 = vadd.f32 %v1845, %v1846
    %v1850 = vrot.slane %v1849, 4
    %v1851 = vadd.f32 %v1849, %v1850
    %v1852 = vrot.slane %v1851, 2
    %v1853 = vadd.f32 %v1851, %v1852
    %v1854 = vrot.slane %v1853, 1
    %v1855 = vadd.f32 %v1853, %v1854
    %v1856 = vadd.f32 %v1847, %v1848
    %v1857 = vrot.slane %v1856, 4
    %v1858 = vadd.f32 %v1856, %v1857
    %v1859 = vrot.slane %v1858, 2
    %v1860 = vadd.f32 %v1858, %v1859
    %v1861 = vrot.slane %v1860, 1
    %v1862 = vadd.f32 %v1860, %v1861
    %v1863 = vld [vmem:[%s8] sm:$0x1]
    %v1865 = vlaneseq
    %v1866 = vshrl.u32 %v1865, 7
    %v1867 = vsub.s32 0, %v1866
    %v1868 = vrot.slane %v1863, %v1867
    %v1870 = vadd.f32 %v1855, %v1868
    %v1871 = vadd.f32 %v1862, %v1868
    %v1874 = vrot.slane %v1871, 7
    %vm1875 = vcmask 1041409
    %v1876 = vsel %vm1875, %v1874, %v1870
    %1878 = vst [vmem:[#allocation5] sm:$0x3] %v1876
    // Predicated region
    $region42: #{align_cond_discriminator.1} parent=1 // pred_check
      _
    $region43: #{align_cond_discriminator.1} parent=1 // pred_check_branch
      %1880 = sbr.rel (0) target = $region45
    $region44: #{align_cond_discriminator.1} parent=1 // pred_region
      %s1882 = ssub.s32 32, 32
      %1883 = vsyncadd [#allocation4], %s1882
      %s1885 = sshll.u32 [#allocation5], 4
      %s1886 = int_to_ptr.vmem [resolvable:$true] %s1885
      %1888 = dma.vmem_to_hbm [thread:$0]  %s1886, 32, %s9, [#allocation4]
    $region45: #{align_cond_discriminator.1} parent=1 // pred_fallthru
      _
    // Predicated region
    $region46: #{align_cond_discriminator.1} parent=1 // pred_check
      _
    $region47: #{align_cond_discriminator.1} parent=1 // pred_check_branch
      %1890 = sbr.rel (0) target = $region49
    $region48: #{align_cond_discriminator.1} parent=1 // pred_region
      %1891 = dma.done [#allocation4], 32
    $region49: #{align_cond_discriminator.1} parent=1 // pred_fallthru
      _
    %1892 = vsyncpa [#allocation3], 1
    %1893 = vsyncpa [#allocation4], 1

</llo_original>
